<compile_context>
chip_gen: v6e
topology: v6e:2x2x1
jax: 0.10.0
libtpu: 0.0.40
codegen_flags: <defaults>
</compile_context>

<pallas_src>
import functools

import jax
import jax.numpy as jnp
import numpy as np
from jax.experimental import pallas as pl
from jax.experimental.pallas import tpu as pltpu

# ----------------------------- configuration -------------------------------
HEIGHT = 16                 # config.height
WIDTH = 16                  # config.width
DEPTH = 8                   # config.depth_samples
PIXEL_SIZE = 1.0            # config.pixel_size
EXTENT = (16.0, 16.0, 8.0)  # field extent in Angstroms
INTEGRATION_DEPTH = EXTENT[2]
DZ = INTEGRATION_DEPTH / DEPTH
HIDDEN = 32                 # synthetic MLP field hidden width
BATCH = 2


# ------------------------------ grid helper --------------------------------
def make_base_query_points(h, w, d, pixel_size, integration_depth):
    """JAX port of torch make_base_query_points: [H, W, D, 4] homogeneous."""
    px = (jnp.arange(h, dtype=jnp.float32) - (h / 2 - 0.5)) * pixel_size
    py = (jnp.arange(w, dtype=jnp.float32) - (w / 2 - 0.5)) * pixel_size
    pz = (jnp.arange(d, dtype=jnp.float32) - (d / 2 - 0.5)) * (integration_depth / d)
    X, Y, Z = jnp.meshgrid(px, py, pz, indexing="ij")
    return jnp.stack([X, Y, Z, jnp.ones_like(X)], axis=-1)


# ------------------------------- Pallas kernel ------------------------------
def projection_kernel(tmat_ref, pts_ref, w1t_ref, b1t_ref, w2_ref, b2_ref,
                      out_ref, *, depth, hw, dz):
    # pts: (4, N) with N = depth*hw; column n = d*hw + pixel (depth-major).
    t = tmat_ref[0]                                            # (4, 4)
    pts = pts_ref[...]                                         # (4, N)

    # q = T @ p as four broadcast FMAs on the VPU (avoids a lane-sparse
    # (.,4)x(4,4) MXU matmul and its relayouts).
    q = (t[:, 0:1] * pts[0:1, :] + t[:, 1:2] * pts[1:2, :]
         + t[:, 2:3] * pts[2:3, :] + t[:, 3:4] * pts[3:4, :])  # (4, N)

    # Homogeneous divide via EUP approximate reciprocal (separate VLIW slot).
    inv_w = pl.reciprocal(q[3:4, :], approx=True)              # (1, N)
    x = q[0:1, :] * inv_w
    y = q[1:2, :] * inv_w
    z = q[2:3, :] * inv_w

    w1t = w1t_ref[...]                                         # (HIDDEN, 3)
    b1t = b1t_ref[...]                                         # (HIDDEN, 1)

    # Field MLP layer 1 + ReLU, evaluated one depth slab at a time and summed
    # over depth on the fly.  Depth slabs are contiguous, 128-aligned lane
    # slices, so this replaces the old dense one-hot "S" matmul with plain
    # VPU adds and keeps the live register set small.
    hsum = None
    for d in range(depth):                                     # static unroll
        lo, hi = d * hw, (d + 1) * hw
        hd = (w1t[:, 0:1] * x[:, lo:hi] + w1t[:, 1:2] * y[:, lo:hi]
              + w1t[:, 2:3] * z[:, lo:hi] + b1t)               # (HIDDEN, hw)
        hd = jnp.maximum(hd, 0.0)
        hsum = hd if hsum is None else hsum + hd

    # Field MLP layer 2 (+ depth-summed bias) as multiply + sublane reduce.
    pot = jnp.sum(hsum * w2_ref[...], axis=0, keepdims=True)   # (1, hw)
    pot = pot + float(depth) * b2_ref[...]
    out_ref[0, :, :] = pot * dz                                # lane-dense store


# ------------------------------- wrapper ------------------------------------
def direct_rectangular_projection(tmat, grid, w1, b1, w2, b2, dz=DZ):
    """tmat: [B,4,4]; grid: [H,W,D,4]; returns diffraction image [B,H,W]."""
    B = tmat.shape[0]
    H, W, D, _ = grid.shape
    HW = H * W
    N = HW * D
    hidden = w1.shape[1]

    # Flatten the sample grid depth-major / pixel-minor, coords on sublanes:
    #   pts_t[:, d*HW + h*W + w] = grid[h, w, d, :]
    pts_t = jnp.transpose(grid, (3, 2, 0, 1)).reshape(4, N)
    w1_t = w1.T                      # (hidden, 3)
    b1_t = b1.T                      # (hidden, 1)
    # w2 is already the (hidden, 1) column used by the kernel; b2 is (1, 1).

    kernel = functools.partial(projection_kernel, depth=D, hw=HW, dz=float(dz))
    cost = pl.CostEstimate(
        flops=int(B * (N * (4 * 7 + 3 + hidden * 8) + HW * (2 * hidden + 2))),
        transcendentals=int(B * N),
        bytes_accessed=int(4 * B * (16 + 4 * N + hidden * 5 + 1 + HW)),
    )

    out = pl.pallas_call(
        kernel,
        out_shape=jax.ShapeDtypeStruct((B, 1, HW), jnp.float32),
        grid=(B,),
        in_specs=[
            pl.BlockSpec((1, 4, 4), lambda b: (b, 0, 0)),      # transform T
            pl.BlockSpec((4, N), lambda b: (0, 0)),            # query points^T
            pl.BlockSpec((hidden, 3), lambda b: (0, 0)),       # field W1^T
            pl.BlockSpec((hidden, 1), lambda b: (0, 0)),       # field b1^T
            pl.BlockSpec((hidden, 1), lambda b: (0, 0)),       # field W2 (column)
            pl.BlockSpec((1, 1), lambda b: (0, 0)),            # field b2
        ],
        out_specs=pl.BlockSpec((1, 1, HW), lambda b: (b, 0, 0)),
        compiler_params=pltpu.CompilerParams(
            dimension_semantics=("parallel",)),                # v7x: split B over TCs
        cost_estimate=cost,
    )(tmat, pts_t, w1_t, b1_t, w2, b2)
    return out.reshape(B, H, W)


# ------------------------------ reference -----------------------------------
def reference_forward(tmat, grid, w1, b1, w2, b2, dz):
    hp = jax.lax.Precision.HIGHEST
    q = jnp.einsum("bij,hwdj->bhwdi", tmat, grid, precision=hp)
    xyz = q[..., :3] / q[..., 3:4]
    h = jnp.maximum(jnp.einsum("bhwdi,ij->bhwdj", xyz, w1, precision=hp) + b1[0], 0.0)
    pot = jnp.einsum("bhwdj,jk->bhwdk", h, w2, precision=hp)[..., 0] + b2[0, 0]
    return pot.sum(axis=-1) * dz


# --------------------------------- main --------------------------------------
if __name__ == "__main__":
    key = jax.random.PRNGKey(0)
    k1, k2, k3, k4, k5 = jax.random.split(key, 5)

    # Affine shot transforms (bottom row stays [0,0,0,1] so w stays well-defined).
    tmat = jnp.tile(jnp.eye(4, dtype=jnp.float32)[None], (BATCH, 1, 1))
    tmat = tmat.at[:, :3, :].add(0.1 * jax.random.normal(k1, (BATCH, 3, 4), jnp.float32))

    # Deterministic synthetic field parameters.
    w1 = 0.3 * jax.random.normal(k2, (3, HIDDEN), jnp.float32)
    b1 = 0.1 * jax.random.normal(k3, (1, HIDDEN), jnp.float32)
    w2 = 0.3 * jax.random.normal(k4, (HIDDEN, 1), jnp.float32)
    b2 = 0.1 * jax.random.normal(k5, (1, 1), jnp.float32)

    # TODO(synk): training-mode GridJitter (uniform jitter of the sample grid)
    # is inactive at inference and is not implemented here.
    grid = make_base_query_points(HEIGHT, WIDTH, DEPTH, PIXEL_SIZE, INTEGRATION_DEPTH)

    image = direct_rectangular_projection(tmat, grid, w1, b1, w2, b2)
    image = jax.block_until_ready(image)

    ref = reference_forward(tmat, grid, w1, b1, w2, b2, DZ)
    np.testing.assert_allclose(np.asarray(image), np.asarray(ref), rtol=2e-2, atol=2e-2)
    print("KERNEL_OK")
</pallas_src>

<mosaic_0001>
module attributes {stable_mosaic.version = 11 : i64} {
  func.func @projection_kernel(%arg0: i32, %arg1: memref<1x4x4xf32, #tpu.memory_space<vmem>>, %arg2: memref<4x2048xf32, #tpu.memory_space<vmem>>, %arg3: memref<32x3xf32, #tpu.memory_space<vmem>>, %arg4: memref<32x1xf32, #tpu.memory_space<vmem>>, %arg5: memref<32x1xf32, #tpu.memory_space<vmem>>, %arg6: memref<1x1xf32, #tpu.memory_space<vmem>>, %arg7: memref<1x1x256xf32, #tpu.memory_space<vmem>>) attributes {dimension_semantics = [#tpu.dimension_semantics<parallel>], iteration_bounds = array<i64: 2>, scalar_prefetch = 0 : i64, scratch_operands = 0 : i64, tpu.core_type = #tpu.core_type<tc>, window_params = [{transform_indices = @transform_0, window_bounds = array<i64: 1, 4, 4>}, {pipeline_mode = #tpu.pipeline_mode<synchronous>, transform_indices = @transform_1, window_bounds = array<i64: 4, 2048>}, {pipeline_mode = #tpu.pipeline_mode<synchronous>, transform_indices = @transform_2, window_bounds = array<i64: 32, 3>}, {pipeline_mode = #tpu.pipeline_mode<synchronous>, transform_indices = @transform_3, window_bounds = array<i64: 32, 1>}, {pipeline_mode = #tpu.pipeline_mode<synchronous>, transform_indices = @transform_4, window_bounds = array<i64: 32, 1>}, {pipeline_mode = #tpu.pipeline_mode<synchronous>, transform_indices = @transform_5, window_bounds = array<i64: 1, 1>}, {transform_indices = @transform_6, window_bounds = array<i64: 1, 1, 256>}]} {
    %c0 = arith.constant 0 : index
    %c0_0 = arith.constant 0 : index
    %c0_1 = arith.constant 0 : index
    %0 = vector.load %arg1[%c0, %c0_0, %c0_1] : memref<1x4x4xf32, #tpu.memory_space<vmem>>, vector<1x4x4xf32>
    %1 = vector.shape_cast %0 : vector<1x4x4xf32> to vector<4x4xf32>
    %c0_2 = arith.constant 0 : index
    %c0_3 = arith.constant 0 : index
    %2 = vector.load %arg2[%c0_2, %c0_3] : memref<4x2048xf32, #tpu.memory_space<vmem>>, vector<4x2048xf32>
    %3 = vector.extract_strided_slice %1 {offsets = [0, 0], sizes = [4, 1], strides = [1, 1]} : vector<4x4xf32> to vector<4x1xf32>
    %4 = vector.extract_strided_slice %2 {offsets = [0, 0], sizes = [1, 2048], strides = [1, 1]} : vector<4x2048xf32> to vector<1x2048xf32>
    %5 = vector.broadcast %3 : vector<4x1xf32> to vector<4x2048xf32>
    %6 = vector.broadcast %4 : vector<1x2048xf32> to vector<4x2048xf32>
    %7 = arith.mulf %5, %6 : vector<4x2048xf32>
    %8 = vector.extract_strided_slice %1 {offsets = [0, 1], sizes = [4, 1], strides = [1, 1]} : vector<4x4xf32> to vector<4x1xf32>
    %9 = vector.extract_strided_slice %2 {offsets = [1, 0], sizes = [1, 2048], strides = [1, 1]} : vector<4x2048xf32> to vector<1x2048xf32>
    %10 = vector.broadcast %8 : vector<4x1xf32> to vector<4x2048xf32>
    %11 = vector.broadcast %9 : vector<1x2048xf32> to vector<4x2048xf32>
    %12 = arith.mulf %10, %11 : vector<4x2048xf32>
    %13 = arith.addf %7, %12 : vector<4x2048xf32>
    %14 = vector.extract_strided_slice %1 {offsets = [0, 2], sizes = [4, 1], strides = [1, 1]} : vector<4x4xf32> to vector<4x1xf32>
    %15 = vector.extract_strided_slice %2 {offsets = [2, 0], sizes = [1, 2048], strides = [1, 1]} : vector<4x2048xf32> to vector<1x2048xf32>
    %16 = vector.broadcast %14 : vector<4x1xf32> to vector<4x2048xf32>
    %17 = vector.broadcast %15 : vector<1x2048xf32> to vector<4x2048xf32>
    %18 = arith.mulf %16, %17 : vector<4x2048xf32>
    %19 = arith.addf %13, %18 : vector<4x2048xf32>
    %20 = vector.extract_strided_slice %1 {offsets = [0, 3], sizes = [4, 1], strides = [1, 1]} : vector<4x4xf32> to vector<4x1xf32>
    %21 = vector.extract_strided_slice %2 {offsets = [3, 0], sizes = [1, 2048], strides = [1, 1]} : vector<4x2048xf32> to vector<1x2048xf32>
    %22 = vector.broadcast %20 : vector<4x1xf32> to vector<4x2048xf32>
    %23 = vector.broadcast %21 : vector<1x2048xf32> to vector<4x2048xf32>
    %24 = arith.mulf %22, %23 : vector<4x2048xf32>
    %25 = arith.addf %19, %24 : vector<4x2048xf32>
    %26 = vector.extract_strided_slice %25 {offsets = [3, 0], sizes = [1, 2048], strides = [1, 1]} : vector<4x2048xf32> to vector<1x2048xf32>
    %27 = tpu.reciprocal %26 {approx = true} : vector<1x2048xf32> -> vector<1x2048xf32>
    %28 = vector.extract_strided_slice %25 {offsets = [0, 0], sizes = [1, 2048], strides = [1, 1]} : vector<4x2048xf32> to vector<1x2048xf32>
    %29 = arith.mulf %28, %27 : vector<1x2048xf32>
    %30 = vector.extract_strided_slice %25 {offsets = [1, 0], sizes = [1, 2048], strides = [1, 1]} : vector<4x2048xf32> to vector<1x2048xf32>
    %31 = arith.mulf %30, %27 : vector<1x2048xf32>
    %32 = vector.extract_strided_slice %25 {offsets = [2, 0], sizes = [1, 2048], strides = [1, 1]} : vector<4x2048xf32> to vector<1x2048xf32>
    %33 = arith.mulf %32, %27 : vector<1x2048xf32>
    %c0_4 = arith.constant 0 : index
    %c0_5 = arith.constant 0 : index
    %34 = vector.load %arg3[%c0_4, %c0_5] : memref<32x3xf32, #tpu.memory_space<vmem>>, vector<32x3xf32>
    %c0_6 = arith.constant 0 : index
    %c0_7 = arith.constant 0 : index
    %35 = vector.load %arg4[%c0_6, %c0_7] : memref<32x1xf32, #tpu.memory_space<vmem>>, vector<32x1xf32>
    %36 = vector.extract_strided_slice %34 {offsets = [0, 0], sizes = [32, 1], strides = [1, 1]} : vector<32x3xf32> to vector<32x1xf32>
    %37 = vector.extract_strided_slice %29 {offsets = [0, 0], sizes = [1, 256], strides = [1, 1]} : vector<1x2048xf32> to vector<1x256xf32>
    %38 = vector.broadcast %36 : vector<32x1xf32> to vector<32x256xf32>
    %39 = vector.broadcast %37 : vector<1x256xf32> to vector<32x256xf32>
    %40 = arith.mulf %38, %39 : vector<32x256xf32>
    %41 = vector.extract_strided_slice %34 {offsets = [0, 1], sizes = [32, 1], strides = [1, 1]} : vector<32x3xf32> to vector<32x1xf32>
    %42 = vector.extract_strided_slice %31 {offsets = [0, 0], sizes = [1, 256], strides = [1, 1]} : vector<1x2048xf32> to vector<1x256xf32>
    %43 = vector.broadcast %41 : vector<32x1xf32> to vector<32x256xf32>
    %44 = vector.broadcast %42 : vector<1x256xf32> to vector<32x256xf32>
    %45 = arith.mulf %43, %44 : vector<32x256xf32>
    %46 = arith.addf %40, %45 : vector<32x256xf32>
    %47 = vector.extract_strided_slice %34 {offsets = [0, 2], sizes = [32, 1], strides = [1, 1]} : vector<32x3xf32> to vector<32x1xf32>
    %48 = vector.extract_strided_slice %33 {offsets = [0, 0], sizes = [1, 256], strides = [1, 1]} : vector<1x2048xf32> to vector<1x256xf32>
    %49 = vector.broadcast %47 : vector<32x1xf32> to vector<32x256xf32>
    %50 = vector.broadcast %48 : vector<1x256xf32> to vector<32x256xf32>
    %51 = arith.mulf %49, %50 : vector<32x256xf32>
    %52 = arith.addf %46, %51 : vector<32x256xf32>
    %53 = vector.broadcast %35 : vector<32x1xf32> to vector<32x256xf32>
    %54 = arith.addf %52, %53 : vector<32x256xf32>
    %cst = arith.constant 0.000000e+00 : f32
    %55 = vector.broadcast %cst : f32 to vector<32x256xf32>
    %56 = arith.maximumf %54, %55 : vector<32x256xf32>
    %57 = vector.extract_strided_slice %34 {offsets = [0, 0], sizes = [32, 1], strides = [1, 1]} : vector<32x3xf32> to vector<32x1xf32>
    %58 = vector.extract_strided_slice %29 {offsets = [0, 256], sizes = [1, 256], strides = [1, 1]} : vector<1x2048xf32> to vector<1x256xf32>
    %59 = vector.broadcast %57 : vector<32x1xf32> to vector<32x256xf32>
    %60 = vector.broadcast %58 : vector<1x256xf32> to vector<32x256xf32>
    %61 = arith.mulf %59, %60 : vector<32x256xf32>
    %62 = vector.extract_strided_slice %34 {offsets = [0, 1], sizes = [32, 1], strides = [1, 1]} : vector<32x3xf32> to vector<32x1xf32>
    %63 = vector.extract_strided_slice %31 {offsets = [0, 256], sizes = [1, 256], strides = [1, 1]} : vector<1x2048xf32> to vector<1x256xf32>
    %64 = vector.broadcast %62 : vector<32x1xf32> to vector<32x256xf32>
    %65 = vector.broadcast %63 : vector<1x256xf32> to vector<32x256xf32>
    %66 = arith.mulf %64, %65 : vector<32x256xf32>
    %67 = arith.addf %61, %66 : vector<32x256xf32>
    %68 = vector.extract_strided_slice %34 {offsets = [0, 2], sizes = [32, 1], strides = [1, 1]} : vector<32x3xf32> to vector<32x1xf32>
    %69 = vector.extract_strided_slice %33 {offsets = [0, 256], sizes = [1, 256], strides = [1, 1]} : vector<1x2048xf32> to vector<1x256xf32>
    %70 = vector.broadcast %68 : vector<32x1xf32> to vector<32x256xf32>
    %71 = vector.broadcast %69 : vector<1x256xf32> to vector<32x256xf32>
    %72 = arith.mulf %70, %71 : vector<32x256xf32>
    %73 = arith.addf %67, %72 : vector<32x256xf32>
    %74 = vector.broadcast %35 : vector<32x1xf32> to vector<32x256xf32>
    %75 = arith.addf %73, %74 : vector<32x256xf32>
    %cst_8 = arith.constant 0.000000e+00 : f32
    %76 = vector.broadcast %cst_8 : f32 to vector<32x256xf32>
    %77 = arith.maximumf %75, %76 : vector<32x256xf32>
    %78 = arith.addf %56, %77 : vector<32x256xf32>
    %79 = vector.extract_strided_slice %34 {offsets = [0, 0], sizes = [32, 1], strides = [1, 1]} : vector<32x3xf32> to vector<32x1xf32>
    %80 = vector.extract_strided_slice %29 {offsets = [0, 512], sizes = [1, 256], strides = [1, 1]} : vector<1x2048xf32> to vector<1x256xf32>
    %81 = vector.broadcast %79 : vector<32x1xf32> to vector<32x256xf32>
    %82 = vector.broadcast %80 : vector<1x256xf32> to vector<32x256xf32>
    %83 = arith.mulf %81, %82 : vector<32x256xf32>
    %84 = vector.extract_strided_slice %34 {offsets = [0, 1], sizes = [32, 1], strides = [1, 1]} : vector<32x3xf32> to vector<32x1xf32>
    %85 = vector.extract_strided_slice %31 {offsets = [0, 512], sizes = [1, 256], strides = [1, 1]} : vector<1x2048xf32> to vector<1x256xf32>
    %86 = vector.broadcast %84 : vector<32x1xf32> to vector<32x256xf32>
    %87 = vector.broadcast %85 : vector<1x256xf32> to vector<32x256xf32>
    %88 = arith.mulf %86, %87 : vector<32x256xf32>
    %89 = arith.addf %83, %88 : vector<32x256xf32>
    %90 = vector.extract_strided_slice %34 {offsets = [0, 2], sizes = [32, 1], strides = [1, 1]} : vector<32x3xf32> to vector<32x1xf32>
    %91 = vector.extract_strided_slice %33 {offsets = [0, 512], sizes = [1, 256], strides = [1, 1]} : vector<1x2048xf32> to vector<1x256xf32>
    %92 = vector.broadcast %90 : vector<32x1xf32> to vector<32x256xf32>
    %93 = vector.broadcast %91 : vector<1x256xf32> to vector<32x256xf32>
    %94 = arith.mulf %92, %93 : vector<32x256xf32>
    %95 = arith.addf %89, %94 : vector<32x256xf32>
    %96 = vector.broadcast %35 : vector<32x1xf32> to vector<32x256xf32>
    %97 = arith.addf %95, %96 : vector<32x256xf32>
    %cst_9 = arith.constant 0.000000e+00 : f32
    %98 = vector.broadcast %cst_9 : f32 to vector<32x256xf32>
    %99 = arith.maximumf %97, %98 : vector<32x256xf32>
    %100 = arith.addf %78, %99 : vector<32x256xf32>
    %101 = vector.extract_strided_slice %34 {offsets = [0, 0], sizes = [32, 1], strides = [1, 1]} : vector<32x3xf32> to vector<32x1xf32>
    %102 = vector.extract_strided_slice %29 {offsets = [0, 768], sizes = [1, 256], strides = [1, 1]} : vector<1x2048xf32> to vector<1x256xf32>
    %103 = vector.broadcast %101 : vector<32x1xf32> to vector<32x256xf32>
    %104 = vector.broadcast %102 : vector<1x256xf32> to vector<32x256xf32>
    %105 = arith.mulf %103, %104 : vector<32x256xf32>
    %106 = vector.extract_strided_slice %34 {offsets = [0, 1], sizes = [32, 1], strides = [1, 1]} : vector<32x3xf32> to vector<32x1xf32>
    %107 = vector.extract_strided_slice %31 {offsets = [0, 768], sizes = [1, 256], strides = [1, 1]} : vector<1x2048xf32> to vector<1x256xf32>
    %108 = vector.broadcast %106 : vector<32x1xf32> to vector<32x256xf32>
    %109 = vector.broadcast %107 : vector<1x256xf32> to vector<32x256xf32>
    %110 = arith.mulf %108, %109 : vector<32x256xf32>
    %111 = arith.addf %105, %110 : vector<32x256xf32>
    %112 = vector.extract_strided_slice %34 {offsets = [0, 2], sizes = [32, 1], strides = [1, 1]} : vector<32x3xf32> to vector<32x1xf32>
    %113 = vector.extract_strided_slice %33 {offsets = [0, 768], sizes = [1, 256], strides = [1, 1]} : vector<1x2048xf32> to vector<1x256xf32>
    %114 = vector.broadcast %112 : vector<32x1xf32> to vector<32x256xf32>
    %115 = vector.broadcast %113 : vector<1x256xf32> to vector<32x256xf32>
    %116 = arith.mulf %114, %115 : vector<32x256xf32>
    %117 = arith.addf %111, %116 : vector<32x256xf32>
    %118 = vector.broadcast %35 : vector<32x1xf32> to vector<32x256xf32>
    %119 = arith.addf %117, %118 : vector<32x256xf32>
    %cst_10 = arith.constant 0.000000e+00 : f32
    %120 = vector.broadcast %cst_10 : f32 to vector<32x256xf32>
    %121 = arith.maximumf %119, %120 : vector<32x256xf32>
    %122 = arith.addf %100, %121 : vector<32x256xf32>
    %123 = vector.extract_strided_slice %34 {offsets = [0, 0], sizes = [32, 1], strides = [1, 1]} : vector<32x3xf32> to vector<32x1xf32>
    %124 = vector.extract_strided_slice %29 {offsets = [0, 1024], sizes = [1, 256], strides = [1, 1]} : vector<1x2048xf32> to vector<1x256xf32>
    %125 = vector.broadcast %123 : vector<32x1xf32> to vector<32x256xf32>
    %126 = vector.broadcast %124 : vector<1x256xf32> to vector<32x256xf32>
    %127 = arith.mulf %125, %126 : vector<32x256xf32>
    %128 = vector.extract_strided_slice %34 {offsets = [0, 1], sizes = [32, 1], strides = [1, 1]} : vector<32x3xf32> to vector<32x1xf32>
    %129 = vector.extract_strided_slice %31 {offsets = [0, 1024], sizes = [1, 256], strides = [1, 1]} : vector<1x2048xf32> to vector<1x256xf32>
    %130 = vector.broadcast %128 : vector<32x1xf32> to vector<32x256xf32>
    %131 = vector.broadcast %129 : vector<1x256xf32> to vector<32x256xf32>
    %132 = arith.mulf %130, %131 : vector<32x256xf32>
    %133 = arith.addf %127, %132 : vector<32x256xf32>
    %134 = vector.extract_strided_slice %34 {offsets = [0, 2], sizes = [32, 1], strides = [1, 1]} : vector<32x3xf32> to vector<32x1xf32>
    %135 = vector.extract_strided_slice %33 {offsets = [0, 1024], sizes = [1, 256], strides = [1, 1]} : vector<1x2048xf32> to vector<1x256xf32>
    %136 = vector.broadcast %134 : vector<32x1xf32> to vector<32x256xf32>
    %137 = vector.broadcast %135 : vector<1x256xf32> to vector<32x256xf32>
    %138 = arith.mulf %136, %137 : vector<32x256xf32>
    %139 = arith.addf %133, %138 : vector<32x256xf32>
    %140 = vector.broadcast %35 : vector<32x1xf32> to vector<32x256xf32>
    %141 = arith.addf %139, %140 : vector<32x256xf32>
    %cst_11 = arith.constant 0.000000e+00 : f32
    %142 = vector.broadcast %cst_11 : f32 to vector<32x256xf32>
    %143 = arith.maximumf %141, %142 : vector<32x256xf32>
    %144 = arith.addf %122, %143 : vector<32x256xf32>
    %145 = vector.extract_strided_slice %34 {offsets = [0, 0], sizes = [32, 1], strides = [1, 1]} : vector<32x3xf32> to vector<32x1xf32>
    %146 = vector.extract_strided_slice %29 {offsets = [0, 1280], sizes = [1, 256], strides = [1, 1]} : vector<1x2048xf32> to vector<1x256xf32>
    %147 = vector.broadcast %145 : vector<32x1xf32> to vector<32x256xf32>
    %148 = vector.broadcast %146 : vector<1x256xf32> to vector<32x256xf32>
    %149 = arith.mulf %147, %148 : vector<32x256xf32>
    %150 = vector.extract_strided_slice %34 {offsets = [0, 1], sizes = [32, 1], strides = [1, 1]} : vector<32x3xf32> to vector<32x1xf32>
    %151 = vector.extract_strided_slice %31 {offsets = [0, 1280], sizes = [1, 256], strides = [1, 1]} : vector<1x2048xf32> to vector<1x256xf32>
    %152 = vector.broadcast %150 : vector<32x1xf32> to vector<32x256xf32>
    %153 = vector.broadcast %151 : vector<1x256xf32> to vector<32x256xf32>
    %154 = arith.mulf %152, %153 : vector<32x256xf32>
    %155 = arith.addf %149, %154 : vector<32x256xf32>
    %156 = vector.extract_strided_slice %34 {offsets = [0, 2], sizes = [32, 1], strides = [1, 1]} : vector<32x3xf32> to vector<32x1xf32>
    %157 = vector.extract_strided_slice %33 {offsets = [0, 1280], sizes = [1, 256], strides = [1, 1]} : vector<1x2048xf32> to vector<1x256xf32>
    %158 = vector.broadcast %156 : vector<32x1xf32> to vector<32x256xf32>
    %159 = vector.broadcast %157 : vector<1x256xf32> to vector<32x256xf32>
    %160 = arith.mulf %158, %159 : vector<32x256xf32>
    %161 = arith.addf %155, %160 : vector<32x256xf32>
    %162 = vector.broadcast %35 : vector<32x1xf32> to vector<32x256xf32>
    %163 = arith.addf %161, %162 : vector<32x256xf32>
    %cst_12 = arith.constant 0.000000e+00 : f32
    %164 = vector.broadcast %cst_12 : f32 to vector<32x256xf32>
    %165 = arith.maximumf %163, %164 : vector<32x256xf32>
    %166 = arith.addf %144, %165 : vector<32x256xf32>
    %167 = vector.extract_strided_slice %34 {offsets = [0, 0], sizes = [32, 1], strides = [1, 1]} : vector<32x3xf32> to vector<32x1xf32>
    %168 = vector.extract_strided_slice %29 {offsets = [0, 1536], sizes = [1, 256], strides = [1, 1]} : vector<1x2048xf32> to vector<1x256xf32>
    %169 = vector.broadcast %167 : vector<32x1xf32> to vector<32x256xf32>
    %170 = vector.broadcast %168 : vector<1x256xf32> to vector<32x256xf32>
    %171 = arith.mulf %169, %170 : vector<32x256xf32>
    %172 = vector.extract_strided_slice %34 {offsets = [0, 1], sizes = [32, 1], strides = [1, 1]} : vector<32x3xf32> to vector<32x1xf32>
    %173 = vector.extract_strided_slice %31 {offsets = [0, 1536], sizes = [1, 256], strides = [1, 1]} : vector<1x2048xf32> to vector<1x256xf32>
    %174 = vector.broadcast %172 : vector<32x1xf32> to vector<32x256xf32>
    %175 = vector.broadcast %173 : vector<1x256xf32> to vector<32x256xf32>
    %176 = arith.mulf %174, %175 : vector<32x256xf32>
    %177 = arith.addf %171, %176 : vector<32x256xf32>
    %178 = vector.extract_strided_slice %34 {offsets = [0, 2], sizes = [32, 1], strides = [1, 1]} : vector<32x3xf32> to vector<32x1xf32>
    %179 = vector.extract_strided_slice %33 {offsets = [0, 1536], sizes = [1, 256], strides = [1, 1]} : vector<1x2048xf32> to vector<1x256xf32>
    %180 = vector.broadcast %178 : vector<32x1xf32> to vector<32x256xf32>
    %181 = vector.broadcast %179 : vector<1x256xf32> to vector<32x256xf32>
    %182 = arith.mulf %180, %181 : vector<32x256xf32>
    %183 = arith.addf %177, %182 : vector<32x256xf32>
    %184 = vector.broadcast %35 : vector<32x1xf32> to vector<32x256xf32>
    %185 = arith.addf %183, %184 : vector<32x256xf32>
    %cst_13 = arith.constant 0.000000e+00 : f32
    %186 = vector.broadcast %cst_13 : f32 to vector<32x256xf32>
    %187 = arith.maximumf %185, %186 : vector<32x256xf32>
    %188 = arith.addf %166, %187 : vector<32x256xf32>
    %189 = vector.extract_strided_slice %34 {offsets = [0, 0], sizes = [32, 1], strides = [1, 1]} : vector<32x3xf32> to vector<32x1xf32>
    %190 = vector.extract_strided_slice %29 {offsets = [0, 1792], sizes = [1, 256], strides = [1, 1]} : vector<1x2048xf32> to vector<1x256xf32>
    %191 = vector.broadcast %189 : vector<32x1xf32> to vector<32x256xf32>
    %192 = vector.broadcast %190 : vector<1x256xf32> to vector<32x256xf32>
    %193 = arith.mulf %191, %192 : vector<32x256xf32>
    %194 = vector.extract_strided_slice %34 {offsets = [0, 1], sizes = [32, 1], strides = [1, 1]} : vector<32x3xf32> to vector<32x1xf32>
    %195 = vector.extract_strided_slice %31 {offsets = [0, 1792], sizes = [1, 256], strides = [1, 1]} : vector<1x2048xf32> to vector<1x256xf32>
    %196 = vector.broadcast %194 : vector<32x1xf32> to vector<32x256xf32>
    %197 = vector.broadcast %195 : vector<1x256xf32> to vector<32x256xf32>
    %198 = arith.mulf %196, %197 : vector<32x256xf32>
    %199 = arith.addf %193, %198 : vector<32x256xf32>
    %200 = vector.extract_strided_slice %34 {offsets = [0, 2], sizes = [32, 1], strides = [1, 1]} : vector<32x3xf32> to vector<32x1xf32>
    %201 = vector.extract_strided_slice %33 {offsets = [0, 1792], sizes = [1, 256], strides = [1, 1]} : vector<1x2048xf32> to vector<1x256xf32>
    %202 = vector.broadcast %200 : vector<32x1xf32> to vector<32x256xf32>
    %203 = vector.broadcast %201 : vector<1x256xf32> to vector<32x256xf32>
    %204 = arith.mulf %202, %203 : vector<32x256xf32>
    %205 = arith.addf %199, %204 : vector<32x256xf32>
    %206 = vector.broadcast %35 : vector<32x1xf32> to vector<32x256xf32>
    %207 = arith.addf %205, %206 : vector<32x256xf32>
    %cst_14 = arith.constant 0.000000e+00 : f32
    %208 = vector.broadcast %cst_14 : f32 to vector<32x256xf32>
    %209 = arith.maximumf %207, %208 : vector<32x256xf32>
    %210 = arith.addf %188, %209 : vector<32x256xf32>
    %c0_15 = arith.constant 0 : index
    %c0_16 = arith.constant 0 : index
    %211 = vector.load %arg5[%c0_15, %c0_16] : memref<32x1xf32, #tpu.memory_space<vmem>>, vector<32x1xf32>
    %212 = vector.broadcast %211 : vector<32x1xf32> to vector<32x256xf32>
    %213 = arith.mulf %210, %212 : vector<32x256xf32>
    %cst_17 = arith.constant dense<0.000000e+00> : vector<256xf32>
    %214 = vector.multi_reduction <add>, %213, %cst_17 [0] : vector<32x256xf32> to vector<256xf32>
    %215 = vector.shape_cast %214 : vector<256xf32> to vector<1x256xf32>
    %c0_18 = arith.constant 0 : index
    %c0_19 = arith.constant 0 : index
    %216 = vector.load %arg6[%c0_18, %c0_19] : memref<1x1xf32, #tpu.memory_space<vmem>>, vector<1x1xf32>
    %cst_20 = arith.constant 8.000000e+00 : f32
    %217 = vector.broadcast %cst_20 : f32 to vector<1x1xf32>
    %218 = arith.mulf %217, %216 : vector<1x1xf32>
    %219 = vector.broadcast %218 : vector<1x1xf32> to vector<1x256xf32>
    %220 = arith.addf %215, %219 : vector<1x256xf32>
    %cst_21 = arith.constant 1.000000e+00 : f32
    %221 = vector.broadcast %cst_21 : f32 to vector<1x256xf32>
    %222 = arith.mulf %220, %221 : vector<1x256xf32>
    %c0_22 = arith.constant 0 : index
    %c0_23 = arith.constant 0 : index
    %c0_24 = arith.constant 0 : index
    %223 = vector.load %arg7[%c0_22, %c0_23, %c0_24] : memref<1x1x256xf32, #tpu.memory_space<vmem>>, vector<1x1x256xf32>
    %224 = vector.shape_cast %223 : vector<1x1x256xf32> to vector<1x256xf32>
    %225 = vector.shape_cast %222 : vector<1x256xf32> to vector<1x1x256xf32>
    tpu.vector_store %arg7[%c0_22, %c0_23, %c0_24], %225 {strides = array<i32>} : memref<1x1x256xf32, #tpu.memory_space<vmem>>, vector<1x1x256xf32>,
    return
  }
  func.func @transform_0(%arg0: i32) -> (i32, i32, i32) {
    %c0_i32 = arith.constant 0 : i32
    %c0_i32_0 = arith.constant 0 : i32
    %c0_i32_1 = arith.constant 0 : i32
    return %arg0, %c0_i32, %c0_i32_0 : i32, i32, i32
  }
  func.func @transform_1(%arg0: i32) -> (i32, i32) {
    %c0_i32 = arith.constant 0 : i32
    %c0_i32_0 = arith.constant 0 : i32
    %c0_i32_1 = arith.constant 0 : i32
    return %c0_i32, %c0_i32_0 : i32, i32
  }
  func.func @transform_2(%arg0: i32) -> (i32, i32) {
    %c0_i32 = arith.constant 0 : i32
    %c0_i32_0 = arith.constant 0 : i32
    %c0_i32_1 = arith.constant 0 : i32
    return %c0_i32, %c0_i32_0 : i32, i32
  }
  func.func @transform_3(%arg0: i32) -> (i32, i32) {
    %c0_i32 = arith.constant 0 : i32
    %c0_i32_0 = arith.constant 0 : i32
    %c0_i32_1 = arith.constant 0 : i32
    return %c0_i32, %c0_i32_0 : i32, i32
  }
  func.func @transform_4(%arg0: i32) -> (i32, i32) {
    %c0_i32 = arith.constant 0 : i32
    %c0_i32_0 = arith.constant 0 : i32
    %c0_i32_1 = arith.constant 0 : i32
    return %c0_i32, %c0_i32_0 : i32, i32
  }
  func.func @transform_5(%arg0: i32) -> (i32, i32) {
    %c0_i32 = arith.constant 0 : i32
    %c0_i32_0 = arith.constant 0 : i32
    %c0_i32_1 = arith.constant 0 : i32
    return %c0_i32, %c0_i32_0 : i32, i32
  }
  func.func @transform_6(%arg0: i32) -> (i32, i32, i32) {
    %c0_i32 = arith.constant 0 : i32
    %c0_i32_0 = arith.constant 0 : i32
    %c0_i32_1 = arith.constant 0 : i32
    return %arg0, %c0_i32, %c0_i32_0 : i32, i32, i32
  }
}

</mosaic_0001>

<llo_original>
// kernel: tpu_custom_call.1
$region0: #{tpu_custom_call.1}
  #allocation0 [shape = 'u32[]', space=smem, size = 0x4, offset = 0x4, fixed_abs, tag = 'smem constant byte address 0x4 - core index']
  #allocation1 [shape = 'u32[144,128]{1,0:T(1,128)}', space=vmem, size = 0x12000, scoped, tag = 'internal scratch']
  #allocation2 [shape = 'f32[1,1]{1,0:T(1,128)S(1)}', space=vmem, size = 0x200, scoped, tag = 'scoped memory for tpu_custom_call.1']
  %s0 = inlined_call_operand.vmem [shape: f32[2,4,4], index: 0, kind: input, shape index: {}]
  %s1 = inlined_call_operand.vmem [shape: f32[4,2048], index: 1, kind: input, shape index: {}]
  %s2 = inlined_call_operand.vmem [shape: f32[32,3], index: 2, kind: input, shape index: {}]
  %s3 = inlined_call_operand.vmem [shape: f32[32,1], index: 3, kind: input, shape index: {}]
  %s4 = inlined_call_operand.vmem [shape: f32[32,1], index: 4, kind: input, shape index: {}]
  %s5 = inlined_call_operand.<no memory space> [shape: f32[1,1], index: 5, kind: input, shape index: {}]
  %s6 = inlined_call_operand.hbm [shape: f32[2,1,256], index: 6, kind: output, shape index: {}]
  %s7 = sld [smem:[#allocation0]]
  $region57: #{tpu_custom_call.1} parent=0
    _
  %s9 = ssub.s32 1, %s7
  %s10 = scalar_select 0, %s9, %s7
  %v11 = vstv %s5
  %12 = vst [vmem:[#allocation2] sm:$0x1] %v11
  $region1: #{tpu_custom_call.1} parent=0
    #allocation3 [shape = 'u8[2048]{0}', space=vmem, size = 0x800, scoped, tag = 'output window, operand 0']
    #allocation4 [shape = 's32[2]{0}', space=sflag, size = 0x8, scoped, tag = 'scoped memory for tpu_custom_call.1']
    %13 = vsyncpa [#allocation4], 0
    %s14 = scalar_lea.sflag [#allocation4], 1
    %15 = vsyncpa %s14, 0
    loop: start=0, step=1, limit=4
    $region2: #{tpu_custom_call.1} parent=1 // loop_pre_header
      _
    $region3: #{tpu_custom_call.1} parent=1 // loop_header
      %s17 = sphi 0, %s21
      %p18 = scmp.ge.s32.totalorder %s17, 4
      %s27 = sphi 0, %s29
      %s30 = sphi 0, %s27
      %s31 = sphi 0, %s30
      %s47 = sphi 0, %s31
      %s51 = sphi 0, %s51
      %s53 = sphi 0, %s51
      %s54 = sphi 0, %s53
      %s68 = sphi 0, %s54
      %s72 = sphi 0, %s72
      %s74 = sphi 0, %s72
      %s75 = sphi 0, %s74
      %s89 = sphi 0, %s75
      %s93 = sphi 0, %s93
      %s95 = sphi 0, %s93
      %s96 = sphi 0, %s95
      %s110 = sphi 0, %s96
      %s114 = sphi 0, %s114
      %s116 = sphi 0, %s114
      %s117 = sphi 0, %s116
      %s131 = sphi 0, %s117
      %s135 = sphi 0, %s135
      %s137 = sphi 0, %s135
      %s138 = sphi 0, %s137
      %s152 = sphi 0, %s138
      %s158 = sphi 0, %s160
      %s161 = sphi 0, %s158
      %s162 = sphi 0, %s161
      %s178 = sphi 0, %s162
    $region4: #{tpu_custom_call.1} parent=1 // loop_header_branch
      %20 = sbr.rel (%p18) target = $region8
    $region5: #{tpu_custom_call.1} parent=1 // loop_body
      %s22 = ssub.s32 %s17, 1
      %s23 = ssub.s32 %s17, 2
      %s24 = sadd.s32 %s17, 1
      %s25 = ssub.s32 %s17, %s24
      %p26 = scmp.eq.s32.totalorder %s25, 0
      %s28 = sadd.s32 %s27, 1
      %s29 = scalar_select %p26, %s27, %s28
      %p32 = pneg %p26
      %p33 = scmp.eq.s32.totalorder %s17, 1
      %p34 = por %p32, %p33
      %p35 = scmp.ne.s32.totalorder %s27, %s30
      %p36 = scmp.eq.s32.totalorder %s17, 0
      %p37 = por %p35, %p36
      %p38 = scmp.ne.s32.totalorder %s27, %s30
      %p39 = scmp.eq.s32.totalorder %s22, 1
      %p40 = por %p38, %p39
      %p41 = scmp.ne.s32.totalorder %s30, %s31
      %p42 = scmp.eq.s32.totalorder %s22, 0
      %p43 = por %p41, %p42
      %p44 = scmp.ne.s32.totalorder %s30, %s31
      %p45 = scmp.eq.s32.totalorder %s23, 1
      %p46 = por %p44, %p45
      %p48 = scmp.ne.s32.totalorder %s31, %s47
      %p49 = scmp.eq.s32.totalorder %s23, 0
      %p50 = por %p48, %p49
      %s52 = sadd.s32 %s51, 1
      %p55 = scmp.eq.s32.totalorder %s17, 1
      %p56 = scmp.ne.s32.totalorder %s51, %s53
      %p57 = scmp.eq.s32.totalorder %s17, 0
      %p58 = por %p56, %p57
      %p59 = scmp.ne.s32.totalorder %s51, %s53
      %p60 = scmp.eq.s32.totalorder %s22, 1
      %p61 = por %p59, %p60
      %p62 = scmp.ne.s32.totalorder %s53, %s54
      %p63 = scmp.eq.s32.totalorder %s22, 0
      %p64 = por %p62, %p63
      %p65 = scmp.ne.s32.totalorder %s53, %s54
      %p66 = scmp.eq.s32.totalorder %s23, 1
      %p67 = por %p65, %p66
      %p69 = scmp.ne.s32.totalorder %s54, %s68
      %p70 = scmp.eq.s32.totalorder %s23, 0
      %p71 = por %p69, %p70
      %s73 = sadd.s32 %s72, 1
      %p76 = scmp.eq.s32.totalorder %s17, 1
      %p77 = scmp.ne.s32.totalorder %s72, %s74
      %p78 = scmp.eq.s32.totalorder %s17, 0
      %p79 = por %p77, %p78
      %p80 = scmp.ne.s32.totalorder %s72, %s74
      %p81 = scmp.eq.s32.totalorder %s22, 1
      %p82 = por %p80, %p81
      %p83 = scmp.ne.s32.totalorder %s74, %s75
      %p84 = scmp.eq.s32.totalorder %s22, 0
      %p85 = por %p83, %p84
      %p86 = scmp.ne.s32.totalorder %s74, %s75
      %p87 = scmp.eq.s32.totalorder %s23, 1
      %p88 = por %p86, %p87
      %p90 = scmp.ne.s32.totalorder %s75, %s89
      %p91 = scmp.eq.s32.totalorder %s23, 0
      %p92 = por %p90, %p91
      %s94 = sadd.s32 %s93, 1
      %p97 = scmp.eq.s32.totalorder %s17, 1
      %p98 = scmp.ne.s32.totalorder %s93, %s95
      %p99 = scmp.eq.s32.totalorder %s17, 0
      %p100 = por %p98, %p99
      %p101 = scmp.ne.s32.totalorder %s93, %s95
      %p102 = scmp.eq.s32.totalorder %s22, 1
      %p103 = por %p101, %p102
      %p104 = scmp.ne.s32.totalorder %s95, %s96
      %p105 = scmp.eq.s32.totalorder %s22, 0
      %p106 = por %p104, %p105
      %p107 = scmp.ne.s32.totalorder %s95, %s96
      %p108 = scmp.eq.s32.totalorder %s23, 1
      %p109 = por %p107, %p108
      %p111 = scmp.ne.s32.totalorder %s96, %s110
      %p112 = scmp.eq.s32.totalorder %s23, 0
      %p113 = por %p111, %p112
      %s115 = sadd.s32 %s114, 1
      %p118 = scmp.eq.s32.totalorder %s17, 1
      %p119 = scmp.ne.s32.totalorder %s114, %s116
      %p120 = scmp.eq.s32.totalorder %s17, 0
      %p121 = por %p119, %p120
      %p122 = scmp.ne.s32.totalorder %s114, %s116
      %p123 = scmp.eq.s32.totalorder %s22, 1
      %p124 = por %p122, %p123
      %p125 = scmp.ne.s32.totalorder %s116, %s117
      %p126 = scmp.eq.s32.totalorder %s22, 0
      %p127 = por %p125, %p126
      %p128 = scmp.ne.s32.totalorder %s116, %s117
      %p129 = scmp.eq.s32.totalorder %s23, 1
      %p130 = por %p128, %p129
      %p132 = scmp.ne.s32.totalorder %s117, %s131
      %p133 = scmp.eq.s32.totalorder %s23, 0
      %p134 = por %p132, %p133
      %s136 = sadd.s32 %s135, 1
      %p139 = scmp.eq.s32.totalorder %s17, 1
      %p140 = scmp.ne.s32.totalorder %s135, %s137
      %p141 = scmp.eq.s32.totalorder %s17, 0
      %p142 = por %p140, %p141
      %p143 = scmp.ne.s32.totalorder %s135, %s137
      %p144 = scmp.eq.s32.totalorder %s22, 1
      %p145 = por %p143, %p144
      %p146 = scmp.ne.s32.totalorder %s137, %s138
      %p147 = scmp.eq.s32.totalorder %s22, 0
      %p148 = por %p146, %p147
      %p149 = scmp.ne.s32.totalorder %s137, %s138
      %p150 = scmp.eq.s32.totalorder %s23, 1
      %p151 = por %p149, %p150
      %p153 = scmp.ne.s32.totalorder %s138, %s152
      %p154 = scmp.eq.s32.totalorder %s23, 0
      %p155 = por %p153, %p154
      %s156 = ssub.s32 %s17, %s24
      %p157 = scmp.eq.s32.totalorder %s156, 0
      %s159 = sadd.s32 %s158, 1
      %s160 = scalar_select %p157, %s158, %s159
      %p163 = pneg %p157
      %p164 = scmp.eq.s32.totalorder %s17, 1
      %p165 = por %p163, %p164
      %p166 = scmp.ne.s32.totalorder %s158, %s161
      %p167 = scmp.eq.s32.totalorder %s17, 0
      %p168 = por %p166, %p167
      %p169 = scmp.ne.s32.totalorder %s158, %s161
      %p170 = scmp.eq.s32.totalorder %s22, 1
      %p171 = por %p169, %p170
      %p172 = scmp.ne.s32.totalorder %s161, %s162
      %p173 = scmp.eq.s32.totalorder %s22, 0
      %p174 = por %p172, %p173
      %p175 = scmp.ne.s32.totalorder %s161, %s162
      %p176 = scmp.eq.s32.totalorder %s23, 1
      %p177 = por %p175, %p176
      %p179 = scmp.ne.s32.totalorder %s162, %s178
      %p180 = scmp.eq.s32.totalorder %s23, 0
      %p181 = por %p179, %p180
      %p182 = scmp.le.s32.totalorder 1, %s17
      %p183 = scmp.lt.s32.totalorder %s17, 3
      %p184 = pnand %p182, %p183
      %p185 = pneg %p184
      // Predicated region
      $region9: #{tpu_custom_call.1} parent=5 // pred_check
        _
      $region10: #{tpu_custom_call.1} parent=5 // pred_check_branch
        %187 = sbr.rel (%p184) target = $region12
      $region11: #{tpu_custom_call.1} parent=5 // pred_region
        %s188 = ssub.s32 %s17, 1
        // Predicated region
        $region13: #{tpu_custom_call.1} parent=11 // pred_check
          %p189 = pneg %p64
        $region14: #{tpu_custom_call.1} parent=11 // pred_check_branch
          %191 = sbr.rel (%p189) target = $region16
        $region15: #{tpu_custom_call.1} parent=11 // pred_region
          _
        $region16: #{tpu_custom_call.1} parent=11 // pred_fallthru
          _
        // Predicated region
        $region17: #{tpu_custom_call.1} parent=11 // pred_check
          %p192 = pneg %p85
        $region18: #{tpu_custom_call.1} parent=11 // pred_check_branch
          %194 = sbr.rel (%p192) target = $region20
        $region19: #{tpu_custom_call.1} parent=11 // pred_region
          _
        $region20: #{tpu_custom_call.1} parent=11 // pred_fallthru
          _
        // Predicated region
        $region21: #{tpu_custom_call.1} parent=11 // pred_check
          %p195 = pneg %p106
        $region22: #{tpu_custom_call.1} parent=11 // pred_check_branch
          %197 = sbr.rel (%p195) target = $region24
        $region23: #{tpu_custom_call.1} parent=11 // pred_region
          _
        $region24: #{tpu_custom_call.1} parent=11 // pred_fallthru
          _
        // Predicated region
        $region25: #{tpu_custom_call.1} parent=11 // pred_check
          %p198 = pneg %p127
        $region26: #{tpu_custom_call.1} parent=11 // pred_check_branch
          %200 = sbr.rel (%p198) target = $region28
        $region27: #{tpu_custom_call.1} parent=11 // pred_region
          _
        $region28: #{tpu_custom_call.1} parent=11 // pred_fallthru
          _
        // Predicated region
        $region29: #{tpu_custom_call.1} parent=11 // pred_check
          %p201 = pneg %p148
        $region30: #{tpu_custom_call.1} parent=11 // pred_check_branch
          %203 = sbr.rel (%p201) target = $region32
        $region31: #{tpu_custom_call.1} parent=11 // pred_region
          _
        $region32: #{tpu_custom_call.1} parent=11 // pred_fallthru
          _
      $region12: #{tpu_custom_call.1} parent=5 // pred_fallthru
        _
      %p204 = scmp.lt.s32.totalorder %s17, 2
      // Predicated region
      $region33: #{tpu_custom_call.1} parent=5 // pred_check
        %p205 = pneg %p204
      $region34: #{tpu_custom_call.1} parent=5 // pred_check_branch
        %207 = sbr.rel (%p205) target = $region36
      $region35: #{tpu_custom_call.1} parent=5 // pred_region
        // Predicated region
        $region37: #{tpu_custom_call.1} parent=35 // pred_check
          %p208 = pneg %p37
        $region38: #{tpu_custom_call.1} parent=35 // pred_check_branch
          %210 = sbr.rel (%p208) target = $region40
        $region39: #{tpu_custom_call.1} parent=35 // pred_region
          %p211 = scmp.lt.s32.totalorder %s17, 1
          %s212 = scalar_select %p211, %s17, 1
          %s213 = smul.addr %s212, 4
          %s214 = scalar_lea.vmem %s0, %s213
        $region40: #{tpu_custom_call.1} parent=35 // pred_fallthru
          _
      $region36: #{tpu_custom_call.1} parent=5 // pred_fallthru
        _
      %p215 = scmp.le.s32.totalorder 1, %s17
      %p216 = scmp.lt.s32.totalorder %s17, 3
      %p217 = pnand %p215, %p216
      %p218 = pneg %p217
      // Predicated region
      $region41: #{tpu_custom_call.1} parent=5 // pred_check
        _
      $region42: #{tpu_custom_call.1} parent=5 // pred_check_branch
        %220 = sbr.rel (%p217) target = $region44
      $region43: #{tpu_custom_call.1} parent=5 // pred_region
        %s221 = ssub.s32 %s17, 1
        %p222 = scmp.lt.s32.totalorder %s22, 1
        %s223 = scalar_select %p222, %s22, 1
        %s224 = smul.addr %s223, 4
        %s225 = scalar_lea.vmem %s0, %s224
        %p226 = pneg %p43
        %p227 = pneg %p40
        %p228 = pneg %p64
        %p229 = pneg %p61
        %p230 = pneg %p85
        %p231 = pneg %p82
        %p232 = pneg %p106
        %p233 = pneg %p103
        %p234 = pneg %p127
        %p235 = pneg %p124
        %p236 = pneg %p148
        %p237 = pneg %p145
        %p238 = pneg %p174
        %p239 = pneg %p171
        %s240 = sand.u32 %s161, 1
        %s241 = scalar_lea.sflag [#allocation4], %s240
        %s242 = sand.u32 %s161, 1
        %s243 = smul.addr %s242, 2
        %s244 = scalar_lea.vmem [#allocation3], %s243
        %p245 = scmp.lt.s32.totalorder %s22, 1
        %s246 = scalar_select %p245, %s22, 1
        %s247 = smul.addr %s246, 4
        %s248 = scalar_lea.vmem %s0, %s247
        %v249 = vld [vmem:[%s248] sm:$0xf]
        %v250 = vld [vmem:[%s1] sm:$0xff]
        %v251 = vld [vmem:[%s1 + $0x8] sm:$0xff]
        %v252 = vld [vmem:[%s1 + $0x10] sm:$0xff]
        %v253 = vld [vmem:[%s1 + $0x18] sm:$0xff]
        %v254 = vld [vmem:[%s1 + $0x20] sm:$0xff]
        %v255 = vld [vmem:[%s1 + $0x28] sm:$0xff]
        %v256 = vld [vmem:[%s1 + $0x30] sm:$0xff]
        %v257 = vld [vmem:[%s1 + $0x38] sm:$0xff]
        %259 = vset.pattern.permute.xlu0 0
        %260 = vperm.xlu0 %259, %v249
        %v261 = vpop.permute.xlu0 %260
        %v271 = vlaneseq
        %v272 = vshrl.u32 %v271, 7
        %v273 = vsub.s32 0, %v272
        %v274 = vrot.slane %v250, %v273
        %v275 = vlaneseq
        %v276 = vshrl.u32 %v275, 7
        %v277 = vsub.s32 4, %v276
        %v278 = vrot.slane %v250, %v277
        %v279 = vlaneseq
        %v280 = vshrl.u32 %v279, 7
        %v281 = vsub.s32 0, %v280
        %v282 = vrot.slane %v251, %v281
        %v283 = vlaneseq
        %v284 = vshrl.u32 %v283, 7
        %v285 = vsub.s32 4, %v284
        %v286 = vrot.slane %v251, %v285
        %v287 = vlaneseq
        %v288 = vshrl.u32 %v287, 7
        %v289 = vsub.s32 0, %v288
        %v290 = vrot.slane %v252, %v289
        %v291 = vlaneseq
        %v292 = vshrl.u32 %v291, 7
        %v293 = vsub.s32 4, %v292
        %v294 = vrot.slane %v252, %v293
        %v295 = vlaneseq
        %v296 = vshrl.u32 %v295, 7
        %v297 = vsub.s32 0, %v296
        %v298 = vrot.slane %v253, %v297
        %v299 = vlaneseq
        %v300 = vshrl.u32 %v299, 7
        %v301 = vsub.s32 4, %v300
        %v302 = vrot.slane %v253, %v301
        %v303 = vlaneseq
        %v304 = vshrl.u32 %v303, 7
        %v305 = vsub.s32 0, %v304
        %v306 = vrot.slane %v254, %v305
        %v307 = vlaneseq
        %v308 = vshrl.u32 %v307, 7
        %v309 = vsub.s32 4, %v308
        %v310 = vrot.slane %v254, %v309
        %v311 = vlaneseq
        %v312 = vshrl.u32 %v311, 7
        %v313 = vsub.s32 0, %v312
        %v314 = vrot.slane %v255, %v313
        %v315 = vlaneseq
        %v316 = vshrl.u32 %v315, 7
        %v317 = vsub.s32 4, %v316
        %v318 = vrot.slane %v255, %v317
        %v319 = vlaneseq
        %v320 = vshrl.u32 %v319, 7
        %v321 = vsub.s32 0, %v320
        %v322 = vrot.slane %v256, %v321
        %v323 = vlaneseq
        %v324 = vshrl.u32 %v323, 7
        %v325 = vsub.s32 4, %v324
        %v326 = vrot.slane %v256, %v325
        %v327 = vlaneseq
        %v328 = vshrl.u32 %v327, 7
        %v329 = vsub.s32 0, %v328
        %v330 = vrot.slane %v257, %v329
        %v331 = vlaneseq
        %v332 = vshrl.u32 %v331, 7
        %v333 = vsub.s32 4, %v332
        %v334 = vrot.slane %v257, %v333
        %v351 = vlaneseq
        %v352 = vshrl.u32 %v351, 7
        %v353 = vsub.s32 0, %v352
        %v354 = vrot.slane %v274, %v353
        %v355 = vlaneseq
        %v356 = vshrl.u32 %v355, 7
        %v357 = vsub.s32 0, %v356
        %v358 = vrot.slane %v278, %v357
        %v359 = vlaneseq
        %v360 = vshrl.u32 %v359, 7
        %v361 = vsub.s32 0, %v360
        %v362 = vrot.slane %v282, %v361
        %v363 = vlaneseq
        %v364 = vshrl.u32 %v363, 7
        %v365 = vsub.s32 0, %v364
        %v366 = vrot.slane %v286, %v365
        %v367 = vlaneseq
        %v368 = vshrl.u32 %v367, 7
        %v369 = vsub.s32 0, %v368
        %v370 = vrot.slane %v290, %v369
        %v371 = vlaneseq
        %v372 = vshrl.u32 %v371, 7
        %v373 = vsub.s32 0, %v372
        %v374 = vrot.slane %v294, %v373
        %v375 = vlaneseq
        %v376 = vshrl.u32 %v375, 7
        %v377 = vsub.s32 0, %v376
        %v378 = vrot.slane %v298, %v377
        %v379 = vlaneseq
        %v380 = vshrl.u32 %v379, 7
        %v381 = vsub.s32 0, %v380
        %v382 = vrot.slane %v302, %v381
        %v383 = vlaneseq
        %v384 = vshrl.u32 %v383, 7
        %v385 = vsub.s32 0, %v384
        %v386 = vrot.slane %v306, %v385
        %v387 = vlaneseq
        %v388 = vshrl.u32 %v387, 7
        %v389 = vsub.s32 0, %v388
        %v390 = vrot.slane %v310, %v389
        %v391 = vlaneseq
        %v392 = vshrl.u32 %v391, 7
        %v393 = vsub.s32 0, %v392
        %v394 = vrot.slane %v314, %v393
        %v395 = vlaneseq
        %v396 = vshrl.u32 %v395, 7
        %v397 = vsub.s32 0, %v396
        %v398 = vrot.slane %v318, %v397
        %v399 = vlaneseq
        %v400 = vshrl.u32 %v399, 7
        %v401 = vsub.s32 0, %v400
        %v402 = vrot.slane %v322, %v401
        %v403 = vlaneseq
        %v404 = vshrl.u32 %v403, 7
        %v405 = vsub.s32 0, %v404
        %v406 = vrot.slane %v326, %v405
        %v407 = vlaneseq
        %v408 = vshrl.u32 %v407, 7
        %v409 = vsub.s32 0, %v408
        %v410 = vrot.slane %v330, %v409
        %v411 = vlaneseq
        %v412 = vshrl.u32 %v411, 7
        %v413 = vsub.s32 0, %v412
        %v414 = vrot.slane %v334, %v413
        %v415 = vmul.f32 %v261, %v354
        %v416 = vmul.f32 %v261, %v358
        %v417 = vmul.f32 %v261, %v362
        %v418 = vmul.f32 %v261, %v366
        %v419 = vmul.f32 %v261, %v370
        %v420 = vmul.f32 %v261, %v374
        %v421 = vmul.f32 %v261, %v378
        %v422 = vmul.f32 %v261, %v382
        %v423 = vmul.f32 %v261, %v386
        %v424 = vmul.f32 %v261, %v390
        %v425 = vmul.f32 %v261, %v394
        %v426 = vmul.f32 %v261, %v398
        %v427 = vmul.f32 %v261, %v402
        %v428 = vmul.f32 %v261, %v406
        %v429 = vmul.f32 %v261, %v410
        %v430 = vmul.f32 %v261, %v414
        %431 = vset.pattern.permute.xlu0 1
        %432 = vperm.xlu0 %431, %v249
        %v433 = vpop.permute.xlu0 %432
        %v435 = vlaneseq
        %v436 = vshrl.u32 %v435, 7
        %v437 = vsub.s32 1, %v436
        %v438 = vrot.slane %v250, %v437
        %v439 = vlaneseq
        %v440 = vshrl.u32 %v439, 7
        %v441 = vsub.s32 5, %v440
        %v442 = vrot.slane %v250, %v441
        %v443 = vlaneseq
        %v444 = vshrl.u32 %v443, 7
        %v445 = vsub.s32 1, %v444
        %v446 = vrot.slane %v251, %v445
        %v447 = vlaneseq
        %v448 = vshrl.u32 %v447, 7
        %v449 = vsub.s32 5, %v448
        %v450 = vrot.slane %v251, %v449
        %v451 = vlaneseq
        %v452 = vshrl.u32 %v451, 7
        %v453 = vsub.s32 1, %v452
        %v454 = vrot.slane %v252, %v453
        %v455 = vlaneseq
        %v456 = vshrl.u32 %v455, 7
        %v457 = vsub.s32 5, %v456
        %v458 = vrot.slane %v252, %v457
        %v459 = vlaneseq
        %v460 = vshrl.u32 %v459, 7
        %v461 = vsub.s32 1, %v460
        %v462 = vrot.slane %v253, %v461
        %v463 = vlaneseq
        %v464 = vshrl.u32 %v463, 7
        %v465 = vsub.s32 5, %v464
        %v466 = vrot.slane %v253, %v465
        %v467 = vlaneseq
        %v468 = vshrl.u32 %v467, 7
        %v469 = vsub.s32 1, %v468
        %v470 = vrot.slane %v254, %v469
        %v471 = vlaneseq
        %v472 = vshrl.u32 %v471, 7
        %v473 = vsub.s32 5, %v472
        %v474 = vrot.slane %v254, %v473
        %v475 = vlaneseq
        %v476 = vshrl.u32 %v475, 7
        %v477 = vsub.s32 1, %v476
        %v478 = vrot.slane %v255, %v477
        %v479 = vlaneseq
        %v480 = vshrl.u32 %v479, 7
        %v481 = vsub.s32 5, %v480
        %v482 = vrot.slane %v255, %v481
        %v483 = vlaneseq
        %v484 = vshrl.u32 %v483, 7
        %v485 = vsub.s32 1, %v484
        %v486 = vrot.slane %v256, %v485
        %v487 = vlaneseq
        %v488 = vshrl.u32 %v487, 7
        %v489 = vsub.s32 5, %v488
        %v490 = vrot.slane %v256, %v489
        %v491 = vlaneseq
        %v492 = vshrl.u32 %v491, 7
        %v493 = vsub.s32 1, %v492
        %v494 = vrot.slane %v257, %v493
        %v495 = vlaneseq
        %v496 = vshrl.u32 %v495, 7
        %v497 = vsub.s32 5, %v496
        %v498 = vrot.slane %v257, %v497
        %v515 = vlaneseq
        %v516 = vshrl.u32 %v515, 7
        %v517 = vsub.s32 1, %v516
        %v518 = vrot.slane %v438, %v517
        %v519 = vlaneseq
        %v520 = vshrl.u32 %v519, 7
        %v521 = vsub.s32 1, %v520
        %v522 = vrot.slane %v442, %v521
        %v523 = vlaneseq
        %v524 = vshrl.u32 %v523, 7
        %v525 = vsub.s32 1, %v524
        %v526 = vrot.slane %v446, %v525
        %v527 = vlaneseq
        %v528 = vshrl.u32 %v527, 7
        %v529 = vsub.s32 1, %v528
        %v530 = vrot.slane %v450, %v529
        %v531 = vlaneseq
        %v532 = vshrl.u32 %v531, 7
        %v533 = vsub.s32 1, %v532
        %v534 = vrot.slane %v454, %v533
        %v535 = vlaneseq
        %v536 = vshrl.u32 %v535, 7
        %v537 = vsub.s32 1, %v536
        %v538 = vrot.slane %v458, %v537
        %v539 = vlaneseq
        %v540 = vshrl.u32 %v539, 7
        %v541 = vsub.s32 1, %v540
        %v542 = vrot.slane %v462, %v541
        %v543 = vlaneseq
        %v544 = vshrl.u32 %v543, 7
        %v545 = vsub.s32 1, %v544
        %v546 = vrot.slane %v466, %v545
        %v547 = vlaneseq
        %v548 = vshrl.u32 %v547, 7
        %v549 = vsub.s32 1, %v548
        %v550 = vrot.slane %v470, %v549
        %v551 = vlaneseq
        %v552 = vshrl.u32 %v551, 7
        %v553 = vsub.s32 1, %v552
        %v554 = vrot.slane %v474, %v553
        %v555 = vlaneseq
        %v556 = vshrl.u32 %v555, 7
        %v557 = vsub.s32 1, %v556
        %v558 = vrot.slane %v478, %v557
        %v559 = vlaneseq
        %v560 = vshrl.u32 %v559, 7
        %v561 = vsub.s32 1, %v560
        %v562 = vrot.slane %v482, %v561
        %v563 = vlaneseq
        %v564 = vshrl.u32 %v563, 7
        %v565 = vsub.s32 1, %v564
        %v566 = vrot.slane %v486, %v565
        %v567 = vlaneseq
        %v568 = vshrl.u32 %v567, 7
        %v569 = vsub.s32 1, %v568
        %v570 = vrot.slane %v490, %v569
        %v571 = vlaneseq
        %v572 = vshrl.u32 %v571, 7
        %v573 = vsub.s32 1, %v572
        %v574 = vrot.slane %v494, %v573
        %v575 = vlaneseq
        %v576 = vshrl.u32 %v575, 7
        %v577 = vsub.s32 1, %v576
        %v578 = vrot.slane %v498, %v577
        %v579 = vmul.f32 %v433, %v518
        %v580 = vmul.f32 %v433, %v522
        %v581 = vmul.f32 %v433, %v526
        %v582 = vmul.f32 %v433, %v530
        %v583 = vmul.f32 %v433, %v534
        %v584 = vmul.f32 %v433, %v538
        %v585 = vmul.f32 %v433, %v542
        %v586 = vmul.f32 %v433, %v546
        %v587 = vmul.f32 %v433, %v550
        %v588 = vmul.f32 %v433, %v554
        %v589 = vmul.f32 %v433, %v558
        %v590 = vmul.f32 %v433, %v562
        %v591 = vmul.f32 %v433, %v566
        %v592 = vmul.f32 %v433, %v570
        %v593 = vmul.f32 %v433, %v574
        %v594 = vmul.f32 %v433, %v578
        %v595 = vadd.f32 %v415, %v579
        %v596 = vadd.f32 %v416, %v580
        %v597 = vadd.f32 %v417, %v581
        %v598 = vadd.f32 %v418, %v582
        %v599 = vadd.f32 %v419, %v583
        %v600 = vadd.f32 %v420, %v584
        %v601 = vadd.f32 %v421, %v585
        %v602 = vadd.f32 %v422, %v586
        %v603 = vadd.f32 %v423, %v587
        %v604 = vadd.f32 %v424, %v588
        %v605 = vadd.f32 %v425, %v589
        %v606 = vadd.f32 %v426, %v590
        %v607 = vadd.f32 %v427, %v591
        %v608 = vadd.f32 %v428, %v592
        %v609 = vadd.f32 %v429, %v593
        %v610 = vadd.f32 %v430, %v594
        %611 = vset.pattern.permute.xlu0 2
        %612 = vperm.xlu0 %611, %v249
        %v613 = vpop.permute.xlu0 %612
        %v615 = vlaneseq
        %v616 = vshrl.u32 %v615, 7
        %v617 = vsub.s32 2, %v616
        %v618 = vrot.slane %v250, %v617
        %v619 = vlaneseq
        %v620 = vshrl.u32 %v619, 7
        %v621 = vsub.s32 6, %v620
        %v622 = vrot.slane %v250, %v621
        %v623 = vlaneseq
        %v624 = vshrl.u32 %v623, 7
        %v625 = vsub.s32 2, %v624
        %v626 = vrot.slane %v251, %v625
        %v627 = vlaneseq
        %v628 = vshrl.u32 %v627, 7
        %v629 = vsub.s32 6, %v628
        %v630 = vrot.slane %v251, %v629
        %v631 = vlaneseq
        %v632 = vshrl.u32 %v631, 7
        %v633 = vsub.s32 2, %v632
        %v634 = vrot.slane %v252, %v633
        %v635 = vlaneseq
        %v636 = vshrl.u32 %v635, 7
        %v637 = vsub.s32 6, %v636
        %v638 = vrot.slane %v252, %v637
        %v639 = vlaneseq
        %v640 = vshrl.u32 %v639, 7
        %v641 = vsub.s32 2, %v640
        %v642 = vrot.slane %v253, %v641
        %v643 = vlaneseq
        %v644 = vshrl.u32 %v643, 7
        %v645 = vsub.s32 6, %v644
        %v646 = vrot.slane %v253, %v645
        %v647 = vlaneseq
        %v648 = vshrl.u32 %v647, 7
        %v649 = vsub.s32 2, %v648
        %v650 = vrot.slane %v254, %v649
        %v651 = vlaneseq
        %v652 = vshrl.u32 %v651, 7
        %v653 = vsub.s32 6, %v652
        %v654 = vrot.slane %v254, %v653
        %v655 = vlaneseq
        %v656 = vshrl.u32 %v655, 7
        %v657 = vsub.s32 2, %v656
        %v658 = vrot.slane %v255, %v657
        %v659 = vlaneseq
        %v660 = vshrl.u32 %v659, 7
        %v661 = vsub.s32 6, %v660
        %v662 = vrot.slane %v255, %v661
        %v663 = vlaneseq
        %v664 = vshrl.u32 %v663, 7
        %v665 = vsub.s32 2, %v664
        %v666 = vrot.slane %v256, %v665
        %v667 = vlaneseq
        %v668 = vshrl.u32 %v667, 7
        %v669 = vsub.s32 6, %v668
        %v670 = vrot.slane %v256, %v669
        %v671 = vlaneseq
        %v672 = vshrl.u32 %v671, 7
        %v673 = vsub.s32 2, %v672
        %v674 = vrot.slane %v257, %v673
        %v675 = vlaneseq
        %v676 = vshrl.u32 %v675, 7
        %v677 = vsub.s32 6, %v676
        %v678 = vrot.slane %v257, %v677
        %v695 = vlaneseq
        %v696 = vshrl.u32 %v695, 7
        %v697 = vsub.s32 2, %v696
        %v698 = vrot.slane %v618, %v697
        %v699 = vlaneseq
        %v700 = vshrl.u32 %v699, 7
        %v701 = vsub.s32 2, %v700
        %v702 = vrot.slane %v622, %v701
        %v703 = vlaneseq
        %v704 = vshrl.u32 %v703, 7
        %v705 = vsub.s32 2, %v704
        %v706 = vrot.slane %v626, %v705
        %v707 = vlaneseq
        %v708 = vshrl.u32 %v707, 7
        %v709 = vsub.s32 2, %v708
        %v710 = vrot.slane %v630, %v709
        %v711 = vlaneseq
        %v712 = vshrl.u32 %v711, 7
        %v713 = vsub.s32 2, %v712
        %v714 = vrot.slane %v634, %v713
        %v715 = vlaneseq
        %v716 = vshrl.u32 %v715, 7
        %v717 = vsub.s32 2, %v716
        %v718 = vrot.slane %v638, %v717
        %v719 = vlaneseq
        %v720 = vshrl.u32 %v719, 7
        %v721 = vsub.s32 2, %v720
        %v722 = vrot.slane %v642, %v721
        %v723 = vlaneseq
        %v724 = vshrl.u32 %v723, 7
        %v725 = vsub.s32 2, %v724
        %v726 = vrot.slane %v646, %v725
        %v727 = vlaneseq
        %v728 = vshrl.u32 %v727, 7
        %v729 = vsub.s32 2, %v728
        %v730 = vrot.slane %v650, %v729
        %v731 = vlaneseq
        %v732 = vshrl.u32 %v731, 7
        %v733 = vsub.s32 2, %v732
        %v734 = vrot.slane %v654, %v733
        %v735 = vlaneseq
        %v736 = vshrl.u32 %v735, 7
        %v737 = vsub.s32 2, %v736
        %v738 = vrot.slane %v658, %v737
        %v739 = vlaneseq
        %v740 = vshrl.u32 %v739, 7
        %v741 = vsub.s32 2, %v740
        %v742 = vrot.slane %v662, %v741
        %v743 = vlaneseq
        %v744 = vshrl.u32 %v743, 7
        %v745 = vsub.s32 2, %v744
        %v746 = vrot.slane %v666, %v745
        %v747 = vlaneseq
        %v748 = vshrl.u32 %v747, 7
        %v749 = vsub.s32 2, %v748
        %v750 = vrot.slane %v670, %v749
        %v751 = vlaneseq
        %v752 = vshrl.u32 %v751, 7
        %v753 = vsub.s32 2, %v752
        %v754 = vrot.slane %v674, %v753
        %v755 = vlaneseq
        %v756 = vshrl.u32 %v755, 7
        %v757 = vsub.s32 2, %v756
        %v758 = vrot.slane %v678, %v757
        %v759 = vmul.f32 %v613, %v698
        %v760 = vmul.f32 %v613, %v702
        %v761 = vmul.f32 %v613, %v706
        %v762 = vmul.f32 %v613, %v710
        %v763 = vmul.f32 %v613, %v714
        %v764 = vmul.f32 %v613, %v718
        %v765 = vmul.f32 %v613, %v722
        %v766 = vmul.f32 %v613, %v726
        %v767 = vmul.f32 %v613, %v730
        %v768 = vmul.f32 %v613, %v734
        %v769 = vmul.f32 %v613, %v738
        %v770 = vmul.f32 %v613, %v742
        %v771 = vmul.f32 %v613, %v746
        %v772 = vmul.f32 %v613, %v750
        %v773 = vmul.f32 %v613, %v754
        %v774 = vmul.f32 %v613, %v758
        %v775 = vadd.f32 %v595, %v759
        %v776 = vadd.f32 %v596, %v760
        %v777 = vadd.f32 %v597, %v761
        %v778 = vadd.f32 %v598, %v762
        %v779 = vadd.f32 %v599, %v763
        %v780 = vadd.f32 %v600, %v764
        %v781 = vadd.f32 %v601, %v765
        %v782 = vadd.f32 %v602, %v766
        %v783 = vadd.f32 %v603, %v767
        %v784 = vadd.f32 %v604, %v768
        %v785 = vadd.f32 %v605, %v769
        %v786 = vadd.f32 %v606, %v770
        %v787 = vadd.f32 %v607, %v771
        %v788 = vadd.f32 %v608, %v772
        %v789 = vadd.f32 %v609, %v773
        %v790 = vadd.f32 %v610, %v774
        %791 = vset.pattern.permute.xlu0 3
        %792 = vperm.xlu0 %791, %v249
        %v793 = vpop.permute.xlu0 %792
        %v795 = vlaneseq
        %v796 = vshrl.u32 %v795, 7
        %v797 = vsub.s32 3, %v796
        %v798 = vrot.slane %v250, %v797
        %v799 = vlaneseq
        %v800 = vshrl.u32 %v799, 7
        %v801 = vsub.s32 7, %v800
        %v802 = vrot.slane %v250, %v801
        %v803 = vlaneseq
        %v804 = vshrl.u32 %v803, 7
        %v805 = vsub.s32 3, %v804
        %v806 = vrot.slane %v251, %v805
        %v807 = vlaneseq
        %v808 = vshrl.u32 %v807, 7
        %v809 = vsub.s32 7, %v808
        %v810 = vrot.slane %v251, %v809
        %v811 = vlaneseq
        %v812 = vshrl.u32 %v811, 7
        %v813 = vsub.s32 3, %v812
        %v814 = vrot.slane %v252, %v813
        %v815 = vlaneseq
        %v816 = vshrl.u32 %v815, 7
        %v817 = vsub.s32 7, %v816
        %v818 = vrot.slane %v252, %v817
        %v819 = vlaneseq
        %v820 = vshrl.u32 %v819, 7
        %v821 = vsub.s32 3, %v820
        %v822 = vrot.slane %v253, %v821
        %v823 = vlaneseq
        %v824 = vshrl.u32 %v823, 7
        %v825 = vsub.s32 7, %v824
        %v826 = vrot.slane %v253, %v825
        %v827 = vlaneseq
        %v828 = vshrl.u32 %v827, 7
        %v829 = vsub.s32 3, %v828
        %v830 = vrot.slane %v254, %v829
        %v831 = vlaneseq
        %v832 = vshrl.u32 %v831, 7
        %v833 = vsub.s32 7, %v832
        %v834 = vrot.slane %v254, %v833
        %v835 = vlaneseq
        %v836 = vshrl.u32 %v835, 7
        %v837 = vsub.s32 3, %v836
        %v838 = vrot.slane %v255, %v837
        %v839 = vlaneseq
        %v840 = vshrl.u32 %v839, 7
        %v841 = vsub.s32 7, %v840
        %v842 = vrot.slane %v255, %v841
        %v843 = vlaneseq
        %v844 = vshrl.u32 %v843, 7
        %v845 = vsub.s32 3, %v844
        %v846 = vrot.slane %v256, %v845
        %v847 = vlaneseq
        %v848 = vshrl.u32 %v847, 7
        %v849 = vsub.s32 7, %v848
        %v850 = vrot.slane %v256, %v849
        %v851 = vlaneseq
        %v852 = vshrl.u32 %v851, 7
        %v853 = vsub.s32 3, %v852
        %v854 = vrot.slane %v257, %v853
        %v855 = vlaneseq
        %v856 = vshrl.u32 %v855, 7
        %v857 = vsub.s32 7, %v856
        %v858 = vrot.slane %v257, %v857
        %v875 = vlaneseq
        %v876 = vshrl.u32 %v875, 7
        %v877 = vsub.s32 3, %v876
        %v878 = vrot.slane %v798, %v877
        %v879 = vlaneseq
        %v880 = vshrl.u32 %v879, 7
        %v881 = vsub.s32 3, %v880
        %v882 = vrot.slane %v802, %v881
        %v883 = vlaneseq
        %v884 = vshrl.u32 %v883, 7
        %v885 = vsub.s32 3, %v884
        %v886 = vrot.slane %v806, %v885
        %v887 = vlaneseq
        %v888 = vshrl.u32 %v887, 7
        %v889 = vsub.s32 3, %v888
        %v890 = vrot.slane %v810, %v889
        %v891 = vlaneseq
        %v892 = vshrl.u32 %v891, 7
        %v893 = vsub.s32 3, %v892
        %v894 = vrot.slane %v814, %v893
        %v895 = vlaneseq
        %v896 = vshrl.u32 %v895, 7
        %v897 = vsub.s32 3, %v896
        %v898 = vrot.slane %v818, %v897
        %v899 = vlaneseq
        %v900 = vshrl.u32 %v899, 7
        %v901 = vsub.s32 3, %v900
        %v902 = vrot.slane %v822, %v901
        %v903 = vlaneseq
        %v904 = vshrl.u32 %v903, 7
        %v905 = vsub.s32 3, %v904
        %v906 = vrot.slane %v826, %v905
        %v907 = vlaneseq
        %v908 = vshrl.u32 %v907, 7
        %v909 = vsub.s32 3, %v908
        %v910 = vrot.slane %v830, %v909
        %v911 = vlaneseq
        %v912 = vshrl.u32 %v911, 7
        %v913 = vsub.s32 3, %v912
        %v914 = vrot.slane %v834, %v913
        %v915 = vlaneseq
        %v916 = vshrl.u32 %v915, 7
        %v917 = vsub.s32 3, %v916
        %v918 = vrot.slane %v838, %v917
        %v919 = vlaneseq
        %v920 = vshrl.u32 %v919, 7
        %v921 = vsub.s32 3, %v920
        %v922 = vrot.slane %v842, %v921
        %v923 = vlaneseq
        %v924 = vshrl.u32 %v923, 7
        %v925 = vsub.s32 3, %v924
        %v926 = vrot.slane %v846, %v925
        %v927 = vlaneseq
        %v928 = vshrl.u32 %v927, 7
        %v929 = vsub.s32 3, %v928
        %v930 = vrot.slane %v850, %v929
        %v931 = vlaneseq
        %v932 = vshrl.u32 %v931, 7
        %v933 = vsub.s32 3, %v932
        %v934 = vrot.slane %v854, %v933
        %v935 = vlaneseq
        %v936 = vshrl.u32 %v935, 7
        %v937 = vsub.s32 3, %v936
        %v938 = vrot.slane %v858, %v937
        %v939 = vmul.f32 %v793, %v878
        %v940 = vmul.f32 %v793, %v882
        %v941 = vmul.f32 %v793, %v886
        %v942 = vmul.f32 %v793, %v890
        %v943 = vmul.f32 %v793, %v894
        %v944 = vmul.f32 %v793, %v898
        %v945 = vmul.f32 %v793, %v902
        %v946 = vmul.f32 %v793, %v906
        %v947 = vmul.f32 %v793, %v910
        %v948 = vmul.f32 %v793, %v914
        %v949 = vmul.f32 %v793, %v918
        %v950 = vmul.f32 %v793, %v922
        %v951 = vmul.f32 %v793, %v926
        %v952 = vmul.f32 %v793, %v930
        %v953 = vmul.f32 %v793, %v934
        %v954 = vmul.f32 %v793, %v938
        %v955 = vadd.f32 %v775, %v939
        %v956 = vadd.f32 %v776, %v940
        %v957 = vadd.f32 %v777, %v941
        %v958 = vadd.f32 %v778, %v942
        %v959 = vadd.f32 %v779, %v943
        %v960 = vadd.f32 %v780, %v944
        %v961 = vadd.f32 %v781, %v945
        %v962 = vadd.f32 %v782, %v946
        %v963 = vadd.f32 %v783, %v947
        %v964 = vadd.f32 %v784, %v948
        %v965 = vadd.f32 %v785, %v949
        %v966 = vadd.f32 %v786, %v950
        %v967 = vadd.f32 %v787, %v951
        %v968 = vadd.f32 %v788, %v952
        %v969 = vadd.f32 %v789, %v953
        %v970 = vadd.f32 %v790, %v954
        %v971 = vrcp.pop %v955
        %v972 = vrcp.pop %v956
        %v973 = vrcp.pop %v957
        %v974 = vrcp.pop %v958
        %v975 = vrcp.pop %v959
        %v976 = vrcp.pop %v960
        %v977 = vrcp.pop %v961
        %v978 = vrcp.pop %v962
        %v979 = vrcp.pop %v963
        %v980 = vrcp.pop %v964
        %v981 = vrcp.pop %v965
        %v982 = vrcp.pop %v966
        %v983 = vrcp.pop %v967
        %v984 = vrcp.pop %v968
        %v985 = vrcp.pop %v969
        %v986 = vrcp.pop %v970
        %v1003 = vrot.slane %v971, 3
        %v1004 = vrot.slane %v972, 3
        %v1005 = vrot.slane %v973, 3
        %v1006 = vrot.slane %v974, 3
        %v1007 = vrot.slane %v975, 3
        %v1008 = vrot.slane %v976, 3
        %v1009 = vrot.slane %v977, 3
        %v1010 = vrot.slane %v978, 3
        %v1011 = vrot.slane %v979, 3
        %v1012 = vrot.slane %v980, 3
        %v1013 = vrot.slane %v981, 3
        %v1014 = vrot.slane %v982, 3
        %v1015 = vrot.slane %v983, 3
        %v1016 = vrot.slane %v984, 3
        %v1017 = vrot.slane %v985, 3
        %v1018 = vrot.slane %v986, 3
        %v1035 = vmul.f32 %v955, %v1003
        %v1036 = vmul.f32 %v956, %v1004
        %v1037 = vmul.f32 %v957, %v1005
        %v1038 = vmul.f32 %v958, %v1006
        %v1039 = vmul.f32 %v959, %v1007
        %v1040 = vmul.f32 %v960, %v1008
        %v1041 = vmul.f32 %v961, %v1009
        %v1042 = vmul.f32 %v962, %v1010
        %v1043 = vmul.f32 %v963, %v1011
        %v1044 = vmul.f32 %v964, %v1012
        %v1045 = vmul.f32 %v965, %v1013
        %v1046 = vmul.f32 %v966, %v1014
        %v1047 = vmul.f32 %v967, %v1015
        %v1048 = vmul.f32 %v968, %v1016
        %v1049 = vmul.f32 %v969, %v1017
        %v1050 = vmul.f32 %v970, %v1018
        %v1051 = vrot.slane %v971, 2
        %v1052 = vrot.slane %v972, 2
        %v1053 = vrot.slane %v973, 2
        %v1054 = vrot.slane %v974, 2
        %v1055 = vrot.slane %v975, 2
        %v1056 = vrot.slane %v976, 2
        %v1057 = vrot.slane %v977, 2
        %v1058 = vrot.slane %v978, 2
        %v1059 = vrot.slane %v979, 2
        %v1060 = vrot.slane %v980, 2
        %v1061 = vrot.slane %v981, 2
        %v1062 = vrot.slane %v982, 2
        %v1063 = vrot.slane %v983, 2
        %v1064 = vrot.slane %v984, 2
        %v1065 = vrot.slane %v985, 2
        %v1066 = vrot.slane %v986, 2
        %v1083 = vmul.f32 %v955, %v1051
        %v1084 = vmul.f32 %v956, %v1052
        %v1085 = vmul.f32 %v957, %v1053
        %v1086 = vmul.f32 %v958, %v1054
        %v1087 = vmul.f32 %v959, %v1055
        %v1088 = vmul.f32 %v960, %v1056
        %v1089 = vmul.f32 %v961, %v1057
        %v1090 = vmul.f32 %v962, %v1058
        %v1091 = vmul.f32 %v963, %v1059
        %v1092 = vmul.f32 %v964, %v1060
        %v1093 = vmul.f32 %v965, %v1061
        %v1094 = vmul.f32 %v966, %v1062
        %v1095 = vmul.f32 %v967, %v1063
        %v1096 = vmul.f32 %v968, %v1064
        %v1097 = vmul.f32 %v969, %v1065
        %v1098 = vmul.f32 %v970, %v1066
        %v1099 = vrot.slane %v971, 1
        %v1100 = vrot.slane %v972, 1
        %v1101 = vrot.slane %v973, 1
        %v1102 = vrot.slane %v974, 1
        %v1103 = vrot.slane %v975, 1
        %v1104 = vrot.slane %v976, 1
        %v1105 = vrot.slane %v977, 1
        %v1106 = vrot.slane %v978, 1
        %v1107 = vrot.slane %v979, 1
        %v1108 = vrot.slane %v980, 1
        %v1109 = vrot.slane %v981, 1
        %v1110 = vrot.slane %v982, 1
        %v1111 = vrot.slane %v983, 1
        %v1112 = vrot.slane %v984, 1
        %v1113 = vrot.slane %v985, 1
        %v1114 = vrot.slane %v986, 1
        %v1131 = vmul.f32 %v955, %v1099
        %v1132 = vmul.f32 %v956, %v1100
        %v1133 = vmul.f32 %v957, %v1101
        %v1134 = vmul.f32 %v958, %v1102
        %v1135 = vmul.f32 %v959, %v1103
        %v1136 = vmul.f32 %v960, %v1104
        %v1137 = vmul.f32 %v961, %v1105
        %v1138 = vmul.f32 %v962, %v1106
        %v1139 = vmul.f32 %v963, %v1107
        %v1140 = vmul.f32 %v964, %v1108
        %v1141 = vmul.f32 %v965, %v1109
        %v1142 = vmul.f32 %v966, %v1110
        %v1143 = vmul.f32 %v967, %v1111
        %v1144 = vmul.f32 %v968, %v1112
        %v1145 = vmul.f32 %v969, %v1113
        %v1146 = vmul.f32 %v970, %v1114
        %v1147 = vld [vmem:[%s2] sm:$0xff]
        %v1148 = vld [vmem:[%s2 + $0x8] sm:$0xff]
        %v1149 = vld [vmem:[%s2 + $0x10] sm:$0xff]
        %v1150 = vld [vmem:[%s2 + $0x18] sm:$0xff]
        %v1151 = vld [vmem:[%s3] sm:$0xff]
        %v1152 = vld [vmem:[%s3 + $0x8] sm:$0xff]
        %v1153 = vld [vmem:[%s3 + $0x10] sm:$0xff]
        %v1154 = vld [vmem:[%s3 + $0x18] sm:$0xff]
        %1156 = vset.pattern.permute.xlu0 0
        %1157 = vperm.xlu0 %1156, %v1147
        %v1158 = vpop.permute.xlu0 %1157
        %1161 = vset.pattern.permute.xlu0 0
        %1162 = vperm.xlu0 %1161, %v1148
        %v1163 = vpop.permute.xlu0 %1162
        %1166 = vset.pattern.permute.xlu0 0
        %1167 = vperm.xlu0 %1166, %v1149
        %v1168 = vpop.permute.xlu0 %1167
        %1171 = vset.pattern.permute.xlu0 0
        %1172 = vperm.xlu0 %1171, %v1150
        %v1173 = vpop.permute.xlu0 %1172
        %v1175 = vlaneseq
        %v1176 = vshrl.u32 %v1175, 7
        %v1177 = vsub.s32 0, %v1176
        %v1178 = vrot.slane %v1035, %v1177
        %v1179 = vlaneseq
        %v1180 = vshrl.u32 %v1179, 7
        %v1181 = vsub.s32 0, %v1180
        %v1182 = vrot.slane %v1036, %v1181
        %v1183 = vmul.f32 %v1158, %v1178
        %v1184 = vmul.f32 %v1158, %v1182
        %v1185 = vmul.f32 %v1163, %v1178
        %v1186 = vmul.f32 %v1163, %v1182
        %v1187 = vmul.f32 %v1168, %v1178
        %v1188 = vmul.f32 %v1168, %v1182
        %v1189 = vmul.f32 %v1173, %v1178
        %v1190 = vmul.f32 %v1173, %v1182
        %1191 = vset.pattern.permute.xlu0 1
        %1192 = vperm.xlu0 %1191, %v1147
        %v1193 = vpop.permute.xlu0 %1192
        %1195 = vset.pattern.permute.xlu0 1
        %1196 = vperm.xlu0 %1195, %v1148
        %v1197 = vpop.permute.xlu0 %1196
        %1199 = vset.pattern.permute.xlu0 1
        %1200 = vperm.xlu0 %1199, %v1149
        %v1201 = vpop.permute.xlu0 %1200
        %1203 = vset.pattern.permute.xlu0 1
        %1204 = vperm.xlu0 %1203, %v1150
        %v1205 = vpop.permute.xlu0 %1204
        %v1207 = vlaneseq
        %v1208 = vshrl.u32 %v1207, 7
        %v1209 = vsub.s32 1, %v1208
        %v1210 = vrot.slane %v1083, %v1209
        %v1211 = vlaneseq
        %v1212 = vshrl.u32 %v1211, 7
        %v1213 = vsub.s32 1, %v1212
        %v1214 = vrot.slane %v1084, %v1213
        %v1215 = vmul.f32 %v1193, %v1210
        %v1216 = vmul.f32 %v1193, %v1214
        %v1217 = vmul.f32 %v1197, %v1210
        %v1218 = vmul.f32 %v1197, %v1214
        %v1219 = vmul.f32 %v1201, %v1210
        %v1220 = vmul.f32 %v1201, %v1214
        %v1221 = vmul.f32 %v1205, %v1210
        %v1222 = vmul.f32 %v1205, %v1214
        %v1223 = vadd.f32 %v1183, %v1215
        %v1224 = vadd.f32 %v1184, %v1216
        %v1225 = vadd.f32 %v1185, %v1217
        %v1226 = vadd.f32 %v1186, %v1218
        %v1227 = vadd.f32 %v1187, %v1219
        %v1228 = vadd.f32 %v1188, %v1220
        %v1229 = vadd.f32 %v1189, %v1221
        %v1230 = vadd.f32 %v1190, %v1222
        %1231 = vset.pattern.permute.xlu0 2
        %1232 = vperm.xlu0 %1231, %v1147
        %v1233 = vpop.permute.xlu0 %1232
        %1235 = vset.pattern.permute.xlu0 2
        %1236 = vperm.xlu0 %1235, %v1148
        %v1237 = vpop.permute.xlu0 %1236
        %1239 = vset.pattern.permute.xlu0 2
        %1240 = vperm.xlu0 %1239, %v1149
        %v1241 = vpop.permute.xlu0 %1240
        %1243 = vset.pattern.permute.xlu0 2
        %1244 = vperm.xlu0 %1243, %v1150
        %v1245 = vpop.permute.xlu0 %1244
        %v1247 = vlaneseq
        %v1248 = vshrl.u32 %v1247, 7
        %v1249 = vsub.s32 2, %v1248
        %v1250 = vrot.slane %v1131, %v1249
        %v1251 = vlaneseq
        %v1252 = vshrl.u32 %v1251, 7
        %v1253 = vsub.s32 2, %v1252
        %v1254 = vrot.slane %v1132, %v1253
        %v1255 = vmul.f32 %v1233, %v1250
        %v1256 = vmul.f32 %v1233, %v1254
        %v1257 = vmul.f32 %v1237, %v1250
        %v1258 = vmul.f32 %v1237, %v1254
        %v1259 = vmul.f32 %v1241, %v1250
        %v1260 = vmul.f32 %v1241, %v1254
        %v1261 = vmul.f32 %v1245, %v1250
        %v1262 = vmul.f32 %v1245, %v1254
        %v1263 = vadd.f32 %v1223, %v1255
        %v1264 = vadd.f32 %v1224, %v1256
        %v1265 = vadd.f32 %v1225, %v1257
        %v1266 = vadd.f32 %v1226, %v1258
        %v1267 = vadd.f32 %v1227, %v1259
        %v1268 = vadd.f32 %v1228, %v1260
        %v1269 = vadd.f32 %v1229, %v1261
        %v1270 = vadd.f32 %v1230, %v1262
        %1272 = vset.pattern.permute.xlu0 0
        %1273 = vperm.xlu0 %1272, %v1151
        %v1274 = vpop.permute.xlu0 %1273
        %1277 = vset.pattern.permute.xlu0 0
        %1278 = vperm.xlu0 %1277, %v1152
        %v1279 = vpop.permute.xlu0 %1278
        %1282 = vset.pattern.permute.xlu0 0
        %1283 = vperm.xlu0 %1282, %v1153
        %v1284 = vpop.permute.xlu0 %1283
        %1287 = vset.pattern.permute.xlu0 0
        %1288 = vperm.xlu0 %1287, %v1154
        %v1289 = vpop.permute.xlu0 %1288
        %v1291 = vadd.f32 %v1263, %v1274
        %v1292 = vadd.f32 %v1264, %v1274
        %v1293 = vadd.f32 %v1265, %v1279
        %v1294 = vadd.f32 %v1266, %v1279
        %v1295 = vadd.f32 %v1267, %v1284
        %v1296 = vadd.f32 %v1268, %v1284
        %v1297 = vadd.f32 %v1269, %v1289
        %v1298 = vadd.f32 %v1270, %v1289
        %v1299 = vmax.f32 %v1291, 0.0
        %v1300 = vmax.f32 %v1292, 0.0
        %v1301 = vmax.f32 %v1293, 0.0
        %v1302 = vmax.f32 %v1294, 0.0
        %v1303 = vmax.f32 %v1295, 0.0
        %v1304 = vmax.f32 %v1296, 0.0
        %v1305 = vmax.f32 %v1297, 0.0
        %v1306 = vmax.f32 %v1298, 0.0
        %v1307 = vlaneseq
        %v1308 = vshrl.u32 %v1307, 7
        %v1309 = vsub.s32 0, %v1308
        %v1310 = vrot.slane %v1037, %v1309
        %v1311 = vlaneseq
        %v1312 = vshrl.u32 %v1311, 7
        %v1313 = vsub.s32 0, %v1312
        %v1314 = vrot.slane %v1038, %v1313
        %v1315 = vmul.f32 %v1158, %v1310
        %v1316 = vmul.f32 %v1158, %v1314
        %v1317 = vmul.f32 %v1163, %v1310
        %v1318 = vmul.f32 %v1163, %v1314
        %v1319 = vmul.f32 %v1168, %v1310
        %v1320 = vmul.f32 %v1168, %v1314
        %v1321 = vmul.f32 %v1173, %v1310
        %v1322 = vmul.f32 %v1173, %v1314
        %v1323 = vlaneseq
        %v1324 = vshrl.u32 %v1323, 7
        %v1325 = vsub.s32 1, %v1324
        %v1326 = vrot.slane %v1085, %v1325
        %v1327 = vlaneseq
        %v1328 = vshrl.u32 %v1327, 7
        %v1329 = vsub.s32 1, %v1328
        %v1330 = vrot.slane %v1086, %v1329
        %v1331 = vmul.f32 %v1193, %v1326
        %v1332 = vmul.f32 %v1193, %v1330
        %v1333 = vmul.f32 %v1197, %v1326
        %v1334 = vmul.f32 %v1197, %v1330
        %v1335 = vmul.f32 %v1201, %v1326
        %v1336 = vmul.f32 %v1201, %v1330
        %v1337 = vmul.f32 %v1205, %v1326
        %v1338 = vmul.f32 %v1205, %v1330
        %v1339 = vadd.f32 %v1315, %v1331
        %v1340 = vadd.f32 %v1316, %v1332
        %v1341 = vadd.f32 %v1317, %v1333
        %v1342 = vadd.f32 %v1318, %v1334
        %v1343 = vadd.f32 %v1319, %v1335
        %v1344 = vadd.f32 %v1320, %v1336
        %v1345 = vadd.f32 %v1321, %v1337
        %v1346 = vadd.f32 %v1322, %v1338
        %v1347 = vlaneseq
        %v1348 = vshrl.u32 %v1347, 7
        %v1349 = vsub.s32 2, %v1348
        %v1350 = vrot.slane %v1133, %v1349
        %v1351 = vlaneseq
        %v1352 = vshrl.u32 %v1351, 7
        %v1353 = vsub.s32 2, %v1352
        %v1354 = vrot.slane %v1134, %v1353
        %v1355 = vmul.f32 %v1233, %v1350
        %v1356 = vmul.f32 %v1233, %v1354
        %v1357 = vmul.f32 %v1237, %v1350
        %v1358 = vmul.f32 %v1237, %v1354
        %v1359 = vmul.f32 %v1241, %v1350
        %v1360 = vmul.f32 %v1241, %v1354
        %v1361 = vmul.f32 %v1245, %v1350
        %v1362 = vmul.f32 %v1245, %v1354
        %v1363 = vadd.f32 %v1339, %v1355
        %v1364 = vadd.f32 %v1340, %v1356
        %v1365 = vadd.f32 %v1341, %v1357
        %v1366 = vadd.f32 %v1342, %v1358
        %v1367 = vadd.f32 %v1343, %v1359
        %v1368 = vadd.f32 %v1344, %v1360
        %v1369 = vadd.f32 %v1345, %v1361
        %v1370 = vadd.f32 %v1346, %v1362
        %v1371 = vadd.f32 %v1363, %v1274
        %v1372 = vadd.f32 %v1364, %v1274
        %v1373 = vadd.f32 %v1365, %v1279
        %v1374 = vadd.f32 %v1366, %v1279
        %v1375 = vadd.f32 %v1367, %v1284
        %v1376 = vadd.f32 %v1368, %v1284
        %v1377 = vadd.f32 %v1369, %v1289
        %v1378 = vadd.f32 %v1370, %v1289
        %v1379 = vmax.f32 %v1371, 0.0
        %v1380 = vmax.f32 %v1372, 0.0
        %v1381 = vmax.f32 %v1373, 0.0
        %v1382 = vmax.f32 %v1374, 0.0
        %v1383 = vmax.f32 %v1375, 0.0
        %v1384 = vmax.f32 %v1376, 0.0
        %v1385 = vmax.f32 %v1377, 0.0
        %v1386 = vmax.f32 %v1378, 0.0
        %v1387 = vadd.f32 %v1299, %v1379
        %v1388 = vadd.f32 %v1300, %v1380
        %v1389 = vadd.f32 %v1301, %v1381
        %v1390 = vadd.f32 %v1302, %v1382
        %v1391 = vadd.f32 %v1303, %v1383
        %v1392 = vadd.f32 %v1304, %v1384
        %v1393 = vadd.f32 %v1305, %v1385
        %v1394 = vadd.f32 %v1306, %v1386
        %v1395 = vlaneseq
        %v1396 = vshrl.u32 %v1395, 7
        %v1397 = vsub.s32 0, %v1396
        %v1398 = vrot.slane %v1039, %v1397
        %v1399 = vlaneseq
        %v1400 = vshrl.u32 %v1399, 7
        %v1401 = vsub.s32 0, %v1400
        %v1402 = vrot.slane %v1040, %v1401
        %v1403 = vmul.f32 %v1158, %v1398
        %v1404 = vmul.f32 %v1158, %v1402
        %v1405 = vmul.f32 %v1163, %v1398
        %v1406 = vmul.f32 %v1163, %v1402
        %v1407 = vmul.f32 %v1168, %v1398
        %v1408 = vmul.f32 %v1168, %v1402
        %v1409 = vmul.f32 %v1173, %v1398
        %v1410 = vmul.f32 %v1173, %v1402
        %v1411 = vlaneseq
        %v1412 = vshrl.u32 %v1411, 7
        %v1413 = vsub.s32 1, %v1412
        %v1414 = vrot.slane %v1087, %v1413
        %v1415 = vlaneseq
        %v1416 = vshrl.u32 %v1415, 7
        %v1417 = vsub.s32 1, %v1416
        %v1418 = vrot.slane %v1088, %v1417
        %v1419 = vmul.f32 %v1193, %v1414
        %v1420 = vmul.f32 %v1193, %v1418
        %v1421 = vmul.f32 %v1197, %v1414
        %v1422 = vmul.f32 %v1197, %v1418
        %v1423 = vmul.f32 %v1201, %v1414
        %v1424 = vmul.f32 %v1201, %v1418
        %v1425 = vmul.f32 %v1205, %v1414
        %v1426 = vmul.f32 %v1205, %v1418
        %v1427 = vadd.f32 %v1403, %v1419
        %v1428 = vadd.f32 %v1404, %v1420
        %v1429 = vadd.f32 %v1405, %v1421
        %v1430 = vadd.f32 %v1406, %v1422
        %v1431 = vadd.f32 %v1407, %v1423
        %v1432 = vadd.f32 %v1408, %v1424
        %v1433 = vadd.f32 %v1409, %v1425
        %v1434 = vadd.f32 %v1410, %v1426
        %v1435 = vlaneseq
        %v1436 = vshrl.u32 %v1435, 7
        %v1437 = vsub.s32 2, %v1436
        %v1438 = vrot.slane %v1135, %v1437
        %v1439 = vlaneseq
        %v1440 = vshrl.u32 %v1439, 7
        %v1441 = vsub.s32 2, %v1440
        %v1442 = vrot.slane %v1136, %v1441
        %v1443 = vmul.f32 %v1233, %v1438
        %v1444 = vmul.f32 %v1233, %v1442
        %v1445 = vmul.f32 %v1237, %v1438
        %v1446 = vmul.f32 %v1237, %v1442
        %v1447 = vmul.f32 %v1241, %v1438
        %v1448 = vmul.f32 %v1241, %v1442
        %v1449 = vmul.f32 %v1245, %v1438
        %v1450 = vmul.f32 %v1245, %v1442
        %v1451 = vadd.f32 %v1427, %v1443
        %v1452 = vadd.f32 %v1428, %v1444
        %v1453 = vadd.f32 %v1429, %v1445
        %v1454 = vadd.f32 %v1430, %v1446
        %v1455 = vadd.f32 %v1431, %v1447
        %v1456 = vadd.f32 %v1432, %v1448
        %v1457 = vadd.f32 %v1433, %v1449
        %v1458 = vadd.f32 %v1434, %v1450
        %v1459 = vadd.f32 %v1451, %v1274
        %v1460 = vadd.f32 %v1452, %v1274
        %v1461 = vadd.f32 %v1453, %v1279
        %v1462 = vadd.f32 %v1454, %v1279
        %v1463 = vadd.f32 %v1455, %v1284
        %v1464 = vadd.f32 %v1456, %v1284
        %v1465 = vadd.f32 %v1457, %v1289
        %v1466 = vadd.f32 %v1458, %v1289
        %v1467 = vmax.f32 %v1459, 0.0
        %v1468 = vmax.f32 %v1460, 0.0
        %v1469 = vmax.f32 %v1461, 0.0
        %v1470 = vmax.f32 %v1462, 0.0
        %v1471 = vmax.f32 %v1463, 0.0
        %v1472 = vmax.f32 %v1464, 0.0
        %v1473 = vmax.f32 %v1465, 0.0
        %v1474 = vmax.f32 %v1466, 0.0
        %v1475 = vadd.f32 %v1387, %v1467
        %v1476 = vadd.f32 %v1388, %v1468
        %v1477 = vadd.f32 %v1389, %v1469
        %v1478 = vadd.f32 %v1390, %v1470
        %v1479 = vadd.f32 %v1391, %v1471
        %v1480 = vadd.f32 %v1392, %v1472
        %v1481 = vadd.f32 %v1393, %v1473
        %v1482 = vadd.f32 %v1394, %v1474
        %v1483 = vlaneseq
        %v1484 = vshrl.u32 %v1483, 7
        %v1485 = vsub.s32 0, %v1484
        %v1486 = vrot.slane %v1041, %v1485
        %v1487 = vlaneseq
        %v1488 = vshrl.u32 %v1487, 7
        %v1489 = vsub.s32 0, %v1488
        %v1490 = vrot.slane %v1042, %v1489
        %v1491 = vmul.f32 %v1158, %v1486
        %v1492 = vmul.f32 %v1158, %v1490
        %v1493 = vmul.f32 %v1163, %v1486
        %v1494 = vmul.f32 %v1163, %v1490
        %v1495 = vmul.f32 %v1168, %v1486
        %v1496 = vmul.f32 %v1168, %v1490
        %v1497 = vmul.f32 %v1173, %v1486
        %v1498 = vmul.f32 %v1173, %v1490
        %v1499 = vlaneseq
        %v1500 = vshrl.u32 %v1499, 7
        %v1501 = vsub.s32 1, %v1500
        %v1502 = vrot.slane %v1089, %v1501
        %v1503 = vlaneseq
        %v1504 = vshrl.u32 %v1503, 7
        %v1505 = vsub.s32 1, %v1504
        %v1506 = vrot.slane %v1090, %v1505
        %v1507 = vmul.f32 %v1193, %v1502
        %v1508 = vmul.f32 %v1193, %v1506
        %v1509 = vmul.f32 %v1197, %v1502
        %v1510 = vmul.f32 %v1197, %v1506
        %v1511 = vmul.f32 %v1201, %v1502
        %v1512 = vmul.f32 %v1201, %v1506
        %v1513 = vmul.f32 %v1205, %v1502
        %v1514 = vmul.f32 %v1205, %v1506
        %v1515 = vadd.f32 %v1491, %v1507
        %v1516 = vadd.f32 %v1492, %v1508
        %v1517 = vadd.f32 %v1493, %v1509
        %v1518 = vadd.f32 %v1494, %v1510
        %v1519 = vadd.f32 %v1495, %v1511
        %v1520 = vadd.f32 %v1496, %v1512
        %v1521 = vadd.f32 %v1497, %v1513
        %v1522 = vadd.f32 %v1498, %v1514
        %v1523 = vlaneseq
        %v1524 = vshrl.u32 %v1523, 7
        %v1525 = vsub.s32 2, %v1524
        %v1526 = vrot.slane %v1137, %v1525
        %v1527 = vlaneseq
        %v1528 = vshrl.u32 %v1527, 7
        %v1529 = vsub.s32 2, %v1528
        %v1530 = vrot.slane %v1138, %v1529
        %v1531 = vmul.f32 %v1233, %v1526
        %v1532 = vmul.f32 %v1233, %v1530
        %v1533 = vmul.f32 %v1237, %v1526
        %v1534 = vmul.f32 %v1237, %v1530
        %v1535 = vmul.f32 %v1241, %v1526
        %v1536 = vmul.f32 %v1241, %v1530
        %v1537 = vmul.f32 %v1245, %v1526
        %v1538 = vmul.f32 %v1245, %v1530
        %v1539 = vadd.f32 %v1515, %v1531
        %v1540 = vadd.f32 %v1516, %v1532
        %v1541 = vadd.f32 %v1517, %v1533
        %v1542 = vadd.f32 %v1518, %v1534
        %v1543 = vadd.f32 %v1519, %v1535
        %v1544 = vadd.f32 %v1520, %v1536
        %v1545 = vadd.f32 %v1521, %v1537
        %v1546 = vadd.f32 %v1522, %v1538
        %v1547 = vadd.f32 %v1539, %v1274
        %v1548 = vadd.f32 %v1540, %v1274
        %v1549 = vadd.f32 %v1541, %v1279
        %v1550 = vadd.f32 %v1542, %v1279
        %v1551 = vadd.f32 %v1543, %v1284
        %v1552 = vadd.f32 %v1544, %v1284
        %v1553 = vadd.f32 %v1545, %v1289
        %v1554 = vadd.f32 %v1546, %v1289
        %v1555 = vmax.f32 %v1547, 0.0
        %v1556 = vmax.f32 %v1548, 0.0
        %v1557 = vmax.f32 %v1549, 0.0
        %v1558 = vmax.f32 %v1550, 0.0
        %v1559 = vmax.f32 %v1551, 0.0
        %v1560 = vmax.f32 %v1552, 0.0
        %v1561 = vmax.f32 %v1553, 0.0
        %v1562 = vmax.f32 %v1554, 0.0
        %v1563 = vadd.f32 %v1475, %v1555
        %v1564 = vadd.f32 %v1476, %v1556
        %v1565 = vadd.f32 %v1477, %v1557
        %v1566 = vadd.f32 %v1478, %v1558
        %v1567 = vadd.f32 %v1479, %v1559
        %v1568 = vadd.f32 %v1480, %v1560
        %v1569 = vadd.f32 %v1481, %v1561
        %v1570 = vadd.f32 %v1482, %v1562
        %v1571 = vlaneseq
        %v1572 = vshrl.u32 %v1571, 7
        %v1573 = vsub.s32 0, %v1572
        %v1574 = vrot.slane %v1043, %v1573
        %v1575 = vlaneseq
        %v1576 = vshrl.u32 %v1575, 7
        %v1577 = vsub.s32 0, %v1576
        %v1578 = vrot.slane %v1044, %v1577
        %v1579 = vmul.f32 %v1158, %v1574
        %v1580 = vmul.f32 %v1158, %v1578
        %v1581 = vmul.f32 %v1163, %v1574
        %v1582 = vmul.f32 %v1163, %v1578
        %v1583 = vmul.f32 %v1168, %v1574
        %v1584 = vmul.f32 %v1168, %v1578
        %v1585 = vmul.f32 %v1173, %v1574
        %v1586 = vmul.f32 %v1173, %v1578
        %v1587 = vlaneseq
        %v1588 = vshrl.u32 %v1587, 7
        %v1589 = vsub.s32 1, %v1588
        %v1590 = vrot.slane %v1091, %v1589
        %v1591 = vlaneseq
        %v1592 = vshrl.u32 %v1591, 7
        %v1593 = vsub.s32 1, %v1592
        %v1594 = vrot.slane %v1092, %v1593
        %v1595 = vmul.f32 %v1193, %v1590
        %v1596 = vmul.f32 %v1193, %v1594
        %v1597 = vmul.f32 %v1197, %v1590
        %v1598 = vmul.f32 %v1197, %v1594
        %v1599 = vmul.f32 %v1201, %v1590
        %v1600 = vmul.f32 %v1201, %v1594
        %v1601 = vmul.f32 %v1205, %v1590
        %v1602 = vmul.f32 %v1205, %v1594
        %v1603 = vadd.f32 %v1579, %v1595
        %v1604 = vadd.f32 %v1580, %v1596
        %v1605 = vadd.f32 %v1581, %v1597
        %v1606 = vadd.f32 %v1582, %v1598
        %v1607 = vadd.f32 %v1583, %v1599
        %v1608 = vadd.f32 %v1584, %v1600
        %v1609 = vadd.f32 %v1585, %v1601
        %v1610 = vadd.f32 %v1586, %v1602
        %v1611 = vlaneseq
        %v1612 = vshrl.u32 %v1611, 7
        %v1613 = vsub.s32 2, %v1612
        %v1614 = vrot.slane %v1139, %v1613
        %v1615 = vlaneseq
        %v1616 = vshrl.u32 %v1615, 7
        %v1617 = vsub.s32 2, %v1616
        %v1618 = vrot.slane %v1140, %v1617
        %v1619 = vmul.f32 %v1233, %v1614
        %v1620 = vmul.f32 %v1233, %v1618
        %v1621 = vmul.f32 %v1237, %v1614
        %v1622 = vmul.f32 %v1237, %v1618
        %v1623 = vmul.f32 %v1241, %v1614
        %v1624 = vmul.f32 %v1241, %v1618
        %v1625 = vmul.f32 %v1245, %v1614
        %v1626 = vmul.f32 %v1245, %v1618
        %v1627 = vadd.f32 %v1603, %v1619
        %v1628 = vadd.f32 %v1604, %v1620
        %v1629 = vadd.f32 %v1605, %v1621
        %v1630 = vadd.f32 %v1606, %v1622
        %v1631 = vadd.f32 %v1607, %v1623
        %v1632 = vadd.f32 %v1608, %v1624
        %v1633 = vadd.f32 %v1609, %v1625
        %v1634 = vadd.f32 %v1610, %v1626
        %v1635 = vadd.f32 %v1627, %v1274
        %v1636 = vadd.f32 %v1628, %v1274
        %v1637 = vadd.f32 %v1629, %v1279
        %v1638 = vadd.f32 %v1630, %v1279
        %v1639 = vadd.f32 %v1631, %v1284
        %v1640 = vadd.f32 %v1632, %v1284
        %v1641 = vadd.f32 %v1633, %v1289
        %v1642 = vadd.f32 %v1634, %v1289
        %v1643 = vmax.f32 %v1635, 0.0
        %v1644 = vmax.f32 %v1636, 0.0
        %v1645 = vmax.f32 %v1637, 0.0
        %v1646 = vmax.f32 %v1638, 0.0
        %v1647 = vmax.f32 %v1639, 0.0
        %v1648 = vmax.f32 %v1640, 0.0
        %v1649 = vmax.f32 %v1641, 0.0
        %v1650 = vmax.f32 %v1642, 0.0
        %v1651 = vadd.f32 %v1563, %v1643
        %v1652 = vadd.f32 %v1564, %v1644
        %v1653 = vadd.f32 %v1565, %v1645
        %v1654 = vadd.f32 %v1566, %v1646
        %v1655 = vadd.f32 %v1567, %v1647
        %v1656 = vadd.f32 %v1568, %v1648
        %v1657 = vadd.f32 %v1569, %v1649
        %v1658 = vadd.f32 %v1570, %v1650
        %v1659 = vlaneseq
        %v1660 = vshrl.u32 %v1659, 7
        %v1661 = vsub.s32 0, %v1660
        %v1662 = vrot.slane %v1045, %v1661
        %v1663 = vlaneseq
        %v1664 = vshrl.u32 %v1663, 7
        %v1665 = vsub.s32 0, %v1664
        %v1666 = vrot.slane %v1046, %v1665
        %v1667 = vmul.f32 %v1158, %v1662
        %v1668 = vmul.f32 %v1158, %v1666
        %v1669 = vmul.f32 %v1163, %v1662
        %v1670 = vmul.f32 %v1163, %v1666
        %v1671 = vmul.f32 %v1168, %v1662
        %v1672 = vmul.f32 %v1168, %v1666
        %v1673 = vmul.f32 %v1173, %v1662
        %v1674 = vmul.f32 %v1173, %v1666
        %v1675 = vlaneseq
        %v1676 = vshrl.u32 %v1675, 7
        %v1677 = vsub.s32 1, %v1676
        %v1678 = vrot.slane %v1093, %v1677
        %v1679 = vlaneseq
        %v1680 = vshrl.u32 %v1679, 7
        %v1681 = vsub.s32 1, %v1680
        %v1682 = vrot.slane %v1094, %v1681
        %v1683 = vmul.f32 %v1193, %v1678
        %v1684 = vmul.f32 %v1193, %v1682
        %v1685 = vmul.f32 %v1197, %v1678
        %v1686 = vmul.f32 %v1197, %v1682
        %v1687 = vmul.f32 %v1201, %v1678
        %v1688 = vmul.f32 %v1201, %v1682
        %v1689 = vmul.f32 %v1205, %v1678
        %v1690 = vmul.f32 %v1205, %v1682
        %v1691 = vadd.f32 %v1667, %v1683
        %v1692 = vadd.f32 %v1668, %v1684
        %v1693 = vadd.f32 %v1669, %v1685
        %v1694 = vadd.f32 %v1670, %v1686
        %v1695 = vadd.f32 %v1671, %v1687
        %v1696 = vadd.f32 %v1672, %v1688
        %v1697 = vadd.f32 %v1673, %v1689
        %v1698 = vadd.f32 %v1674, %v1690
        %v1699 = vlaneseq
        %v1700 = vshrl.u32 %v1699, 7
        %v1701 = vsub.s32 2, %v1700
        %v1702 = vrot.slane %v1141, %v1701
        %v1703 = vlaneseq
        %v1704 = vshrl.u32 %v1703, 7
        %v1705 = vsub.s32 2, %v1704
        %v1706 = vrot.slane %v1142, %v1705
        %v1707 = vmul.f32 %v1233, %v1702
        %v1708 = vmul.f32 %v1233, %v1706
        %v1709 = vmul.f32 %v1237, %v1702
        %v1710 = vmul.f32 %v1237, %v1706
        %v1711 = vmul.f32 %v1241, %v1702
        %v1712 = vmul.f32 %v1241, %v1706
        %v1713 = vmul.f32 %v1245, %v1702
        %v1714 = vmul.f32 %v1245, %v1706
        %v1715 = vadd.f32 %v1691, %v1707
        %v1716 = vadd.f32 %v1692, %v1708
        %v1717 = vadd.f32 %v1693, %v1709
        %v1718 = vadd.f32 %v1694, %v1710
        %v1719 = vadd.f32 %v1695, %v1711
        %v1720 = vadd.f32 %v1696, %v1712
        %v1721 = vadd.f32 %v1697, %v1713
        %v1722 = vadd.f32 %v1698, %v1714
        %v1723 = vadd.f32 %v1715, %v1274
        %v1724 = vadd.f32 %v1716, %v1274
        %v1725 = vadd.f32 %v1717, %v1279
        %v1726 = vadd.f32 %v1718, %v1279
        %v1727 = vadd.f32 %v1719, %v1284
        %v1728 = vadd.f32 %v1720, %v1284
        %v1729 = vadd.f32 %v1721, %v1289
        %v1730 = vadd.f32 %v1722, %v1289
        %v1731 = vmax.f32 %v1723, 0.0
        %v1732 = vmax.f32 %v1724, 0.0
        %v1733 = vmax.f32 %v1725, 0.0
        %v1734 = vmax.f32 %v1726, 0.0
        %v1735 = vmax.f32 %v1727, 0.0
        %v1736 = vmax.f32 %v1728, 0.0
        %v1737 = vmax.f32 %v1729, 0.0
        %v1738 = vmax.f32 %v1730, 0.0
        %v1739 = vadd.f32 %v1651, %v1731
        %v1740 = vadd.f32 %v1652, %v1732
        %v1741 = vadd.f32 %v1653, %v1733
        %v1742 = vadd.f32 %v1654, %v1734
        %v1743 = vadd.f32 %v1655, %v1735
        %v1744 = vadd.f32 %v1656, %v1736
        %v1745 = vadd.f32 %v1657, %v1737
        %v1746 = vadd.f32 %v1658, %v1738
        %v1747 = vlaneseq
        %v1748 = vshrl.u32 %v1747, 7
        %v1749 = vsub.s32 0, %v1748
        %v1750 = vrot.slane %v1047, %v1749
        %v1751 = vlaneseq
        %v1752 = vshrl.u32 %v1751, 7
        %v1753 = vsub.s32 0, %v1752
        %v1754 = vrot.slane %v1048, %v1753
        %v1755 = vmul.f32 %v1158, %v1750
        %v1756 = vmul.f32 %v1158, %v1754
        %v1757 = vmul.f32 %v1163, %v1750
        %v1758 = vmul.f32 %v1163, %v1754
        %v1759 = vmul.f32 %v1168, %v1750
        %v1760 = vmul.f32 %v1168, %v1754
        %v1761 = vmul.f32 %v1173, %v1750
        %v1762 = vmul.f32 %v1173, %v1754
        %v1763 = vlaneseq
        %v1764 = vshrl.u32 %v1763, 7
        %v1765 = vsub.s32 1, %v1764
        %v1766 = vrot.slane %v1095, %v1765
        %v1767 = vlaneseq
        %v1768 = vshrl.u32 %v1767, 7
        %v1769 = vsub.s32 1, %v1768
        %v1770 = vrot.slane %v1096, %v1769
        %v1771 = vmul.f32 %v1193, %v1766
        %v1772 = vmul.f32 %v1193, %v1770
        %v1773 = vmul.f32 %v1197, %v1766
        %v1774 = vmul.f32 %v1197, %v1770
        %v1775 = vmul.f32 %v1201, %v1766
        %v1776 = vmul.f32 %v1201, %v1770
        %v1777 = vmul.f32 %v1205, %v1766
        %v1778 = vmul.f32 %v1205, %v1770
        %v1779 = vadd.f32 %v1755, %v1771
        %v1780 = vadd.f32 %v1756, %v1772
        %v1781 = vadd.f32 %v1757, %v1773
        %v1782 = vadd.f32 %v1758, %v1774
        %v1783 = vadd.f32 %v1759, %v1775
        %v1784 = vadd.f32 %v1760, %v1776
        %v1785 = vadd.f32 %v1761, %v1777
        %v1786 = vadd.f32 %v1762, %v1778
        %v1787 = vlaneseq
        %v1788 = vshrl.u32 %v1787, 7
        %v1789 = vsub.s32 2, %v1788
        %v1790 = vrot.slane %v1143, %v1789
        %v1791 = vlaneseq
        %v1792 = vshrl.u32 %v1791, 7
        %v1793 = vsub.s32 2, %v1792
        %v1794 = vrot.slane %v1144, %v1793
        %v1795 = vmul.f32 %v1233, %v1790
        %v1796 = vmul.f32 %v1233, %v1794
        %v1797 = vmul.f32 %v1237, %v1790
        %v1798 = vmul.f32 %v1237, %v1794
        %v1799 = vmul.f32 %v1241, %v1790
        %v1800 = vmul.f32 %v1241, %v1794
        %v1801 = vmul.f32 %v1245, %v1790
        %v1802 = vmul.f32 %v1245, %v1794
        %v1803 = vadd.f32 %v1779, %v1795
        %v1804 = vadd.f32 %v1780, %v1796
        %v1805 = vadd.f32 %v1781, %v1797
        %v1806 = vadd.f32 %v1782, %v1798
        %v1807 = vadd.f32 %v1783, %v1799
        %v1808 = vadd.f32 %v1784, %v1800
        %v1809 = vadd.f32 %v1785, %v1801
        %v1810 = vadd.f32 %v1786, %v1802
        %v1811 = vadd.f32 %v1803, %v1274
        %v1812 = vadd.f32 %v1804, %v1274
        %v1813 = vadd.f32 %v1805, %v1279
        %v1814 = vadd.f32 %v1806, %v1279
        %v1815 = vadd.f32 %v1807, %v1284
        %v1816 = vadd.f32 %v1808, %v1284
        %v1817 = vadd.f32 %v1809, %v1289
        %v1818 = vadd.f32 %v1810, %v1289
        %v1819 = vmax.f32 %v1811, 0.0
        %v1820 = vmax.f32 %v1812, 0.0
        %v1821 = vmax.f32 %v1813, 0.0
        %v1822 = vmax.f32 %v1814, 0.0
        %v1823 = vmax.f32 %v1815, 0.0
        %v1824 = vmax.f32 %v1816, 0.0
        %v1825 = vmax.f32 %v1817, 0.0
        %v1826 = vmax.f32 %v1818, 0.0
        %v1827 = vadd.f32 %v1739, %v1819
        %v1828 = vadd.f32 %v1740, %v1820
        %v1829 = vadd.f32 %v1741, %v1821
        %v1830 = vadd.f32 %v1742, %v1822
        %v1831 = vadd.f32 %v1743, %v1823
        %v1832 = vadd.f32 %v1744, %v1824
        %v1833 = vadd.f32 %v1745, %v1825
        %v1834 = vadd.f32 %v1746, %v1826
        %v1835 = vlaneseq
        %v1836 = vshrl.u32 %v1835, 7
        %v1837 = vsub.s32 0, %v1836
        %v1838 = vrot.slane %v1049, %v1837
        %v1839 = vlaneseq
        %v1840 = vshrl.u32 %v1839, 7
        %v1841 = vsub.s32 0, %v1840
        %v1842 = vrot.slane %v1050, %v1841
        %v1843 = vmul.f32 %v1158, %v1838
        %v1844 = vmul.f32 %v1158, %v1842
        %v1845 = vmul.f32 %v1163, %v1838
        %v1846 = vmul.f32 %v1163, %v1842
        %v1847 = vmul.f32 %v1168, %v1838
        %v1848 = vmul.f32 %v1168, %v1842
        %v1849 = vmul.f32 %v1173, %v1838
        %v1850 = vmul.f32 %v1173, %v1842
        %v1851 = vlaneseq
        %v1852 = vshrl.u32 %v1851, 7
        %v1853 = vsub.s32 1, %v1852
        %v1854 = vrot.slane %v1097, %v1853
        %v1855 = vlaneseq
        %v1856 = vshrl.u32 %v1855, 7
        %v1857 = vsub.s32 1, %v1856
        %v1858 = vrot.slane %v1098, %v1857
        %v1859 = vmul.f32 %v1193, %v1854
        %v1860 = vmul.f32 %v1193, %v1858
        %v1861 = vmul.f32 %v1197, %v1854
        %v1862 = vmul.f32 %v1197, %v1858
        %v1863 = vmul.f32 %v1201, %v1854
        %v1864 = vmul.f32 %v1201, %v1858
        %v1865 = vmul.f32 %v1205, %v1854
        %v1866 = vmul.f32 %v1205, %v1858
        %v1867 = vadd.f32 %v1843, %v1859
        %v1868 = vadd.f32 %v1844, %v1860
        %v1869 = vadd.f32 %v1845, %v1861
        %v1870 = vadd.f32 %v1846, %v1862
        %v1871 = vadd.f32 %v1847, %v1863
        %v1872 = vadd.f32 %v1848, %v1864
        %v1873 = vadd.f32 %v1849, %v1865
        %v1874 = vadd.f32 %v1850, %v1866
        %v1875 = vlaneseq
        %v1876 = vshrl.u32 %v1875, 7
        %v1877 = vsub.s32 2, %v1876
        %v1878 = vrot.slane %v1145, %v1877
        %v1879 = vlaneseq
        %v1880 = vshrl.u32 %v1879, 7
        %v1881 = vsub.s32 2, %v1880
        %v1882 = vrot.slane %v1146, %v1881
        %v1883 = vmul.f32 %v1233, %v1878
        %v1884 = vmul.f32 %v1233, %v1882
        %v1885 = vmul.f32 %v1237, %v1878
        %v1886 = vmul.f32 %v1237, %v1882
        %v1887 = vmul.f32 %v1241, %v1878
        %v1888 = vmul.f32 %v1241, %v1882
        %v1889 = vmul.f32 %v1245, %v1878
        %v1890 = vmul.f32 %v1245, %v1882
        %v1891 = vadd.f32 %v1867, %v1883
        %v1892 = vadd.f32 %v1868, %v1884
        %v1893 = vadd.f32 %v1869, %v1885
        %v1894 = vadd.f32 %v1870, %v1886
        %v1895 = vadd.f32 %v1871, %v1887
        %v1896 = vadd.f32 %v1872, %v1888
        %v1897 = vadd.f32 %v1873, %v1889
        %v1898 = vadd.f32 %v1874, %v1890
        %v1899 = vadd.f32 %v1891, %v1274
        %v1900 = vadd.f32 %v1892, %v1274
        %v1901 = vadd.f32 %v1893, %v1279
        %v1902 = vadd.f32 %v1894, %v1279
        %v1903 = vadd.f32 %v1895, %v1284
        %v1904 = vadd.f32 %v1896, %v1284
        %v1905 = vadd.f32 %v1897, %v1289
        %v1906 = vadd.f32 %v1898, %v1289
        %v1907 = vmax.f32 %v1899, 0.0
        %v1908 = vmax.f32 %v1900, 0.0
        %v1909 = vmax.f32 %v1901, 0.0
        %v1910 = vmax.f32 %v1902, 0.0
        %v1911 = vmax.f32 %v1903, 0.0
        %v1912 = vmax.f32 %v1904, 0.0
        %v1913 = vmax.f32 %v1905, 0.0
        %v1914 = vmax.f32 %v1906, 0.0
        %v1915 = vadd.f32 %v1827, %v1907
        %v1916 = vadd.f32 %v1828, %v1908
        %v1917 = vadd.f32 %v1829, %v1909
        %v1918 = vadd.f32 %v1830, %v1910
        %v1919 = vadd.f32 %v1831, %v1911
        %v1920 = vadd.f32 %v1832, %v1912
        %v1921 = vadd.f32 %v1833, %v1913
        %v1922 = vadd.f32 %v1834, %v1914
        %v1923 = vld [vmem:[%s4] sm:$0xff]
        %v1924 = vld [vmem:[%s4 + $0x8] sm:$0xff]
        %v1925 = vld [vmem:[%s4 + $0x10] sm:$0xff]
        %v1926 = vld [vmem:[%s4 + $0x18] sm:$0xff]
        %1928 = vset.pattern.permute.xlu0 0
        %1929 = vperm.xlu0 %1928, %v1923
        %v1930 = vpop.permute.xlu0 %1929
        %1933 = vset.pattern.permute.xlu0 0
        %1934 = vperm.xlu0 %1933, %v1924
        %v1935 = vpop.permute.xlu0 %1934
        %1938 = vset.pattern.permute.xlu0 0
        %1939 = vperm.xlu0 %1938, %v1925
        %v1940 = vpop.permute.xlu0 %1939
        %1943 = vset.pattern.permute.xlu0 0
        %1944 = vperm.xlu0 %1943, %v1926
        %v1945 = vpop.permute.xlu0 %1944
        %v1947 = vmul.f32 %v1915, %v1930
        %v1948 = vmul.f32 %v1916, %v1930
        %v1949 = vmul.f32 %v1917, %v1935
        %v1950 = vmul.f32 %v1918, %v1935
        %v1951 = vmul.f32 %v1919, %v1940
        %v1952 = vmul.f32 %v1920, %v1940
        %v1953 = vmul.f32 %v1921, %v1945
        %v1954 = vmul.f32 %v1922, %v1945
        %v1955 = vadd.f32 %v1947, %v1949
        %v1956 = vadd.f32 %v1955, %v1951
        %v1957 = vadd.f32 %v1956, %v1953
        %v1958 = vrot.slane %v1957, 4
        %v1959 = vadd.f32 %v1957, %v1958
        %v1960 = vrot.slane %v1959, 2
        %v1961 = vadd.f32 %v1959, %v1960
        %v1962 = vrot.slane %v1961, 1
        %v1963 = vadd.f32 %v1961, %v1962
        %v1964 = vadd.f32 %v1948, %v1950
        %v1965 = vadd.f32 %v1964, %v1952
        %v1966 = vadd.f32 %v1965, %v1954
        %v1967 = vrot.slane %v1966, 4
        %v1968 = vadd.f32 %v1966, %v1967
        %v1969 = vrot.slane %v1968, 2
        %v1970 = vadd.f32 %v1968, %v1969
        %v1971 = vrot.slane %v1970, 1
        %v1972 = vadd.f32 %v1970, %v1971
        %v1973 = vld [vmem:[#allocation2] sm:$0x1]
        %v1974 = vmul.f32 %v1973, 8.0
        %1976 = vset.pattern.permute.xlu0 0
        %1977 = vperm.xlu0 %1976, %v1974
        %v1978 = vpop.permute.xlu0 %1977
        %v1980 = vlaneseq
        %v1981 = vshrl.u32 %v1980, 7
        %v1982 = vsub.s32 0, %v1981
        %v1983 = vrot.slane %v1978, %v1982
        %v1984 = vadd.f32 %v1963, %v1983
        %v1985 = vadd.f32 %v1972, %v1983
        %v1988 = vcombine.low %v1984, %v1985
        %v1990 = vunpack.c.l.s4 1966171168
        %v1991 = vunpack.c.0.s8 %v1990
        %v1992 = vlaneseq
        %v1993 = vshrl.u32 %v1992, 7
        %v1994 = vsub.s32 %v1991, %v1993
        %v1995 = vrot.slane %v1988, %v1994
        %v1997 = vunpack.c.l.s4 1966171168
        %v1998 = vunpack.c.0.s8 %v1997
        %v1999 = vlaneseq
        %v2000 = vshrl.u32 %v1999, 7
        %v2001 = vsub.s32 %v1998, %v2000
        %v2002 = vrot.slane %v1995, %v2001
        %v2004 = vlaneseq
        %vm2005 = vcmp.ge.s32.totalorder %v2004, 0
        %vm2006 = vcmp.lt.s32.totalorder %v2004, 256
        %vm2007 = vmand %vm2005, %vm2006
        %2008 = vst.msk [vmem:[%s244] sm:$0x3] %vm2007, %v2002
        %s2009 = sand.u32 %s161, 1
        %s2010 = scalar_lea.sflag [#allocation4], %s2009
        %s2011 = sand.u32 %s161, 1
        %s2012 = smul.addr %s2011, 2
        %s2013 = scalar_lea.vmem [#allocation3], %s2012
        // Predicated region
        $region45: #{tpu_custom_call.1} parent=43 // pred_check
          %p2014 = pneg %p171
        $region46: #{tpu_custom_call.1} parent=43 // pred_check_branch
          %2016 = sbr.rel (%p2014) target = $region48
        $region47: #{tpu_custom_call.1} parent=43 // pred_region
          %s2018 = ssub.s32 32, 32
          %2019 = vsyncadd %s2010, %s2018
          %s2020 = smul.addr %s22, 2
          %s2021 = smul.addr %s2020, 16
          %s2022 = scalar_lea.hbm %s6, %s2021
          %s2024 = sshll.u32 %s2013, 4
          %s2025 = int_to_ptr.vmem [resolvable:$true] %s2024
          %2027 = dma.vmem_to_hbm [thread:$0]  %s2025, 32, %s2022, %s2010
        $region48: #{tpu_custom_call.1} parent=43 // pred_fallthru
          _
      $region44: #{tpu_custom_call.1} parent=5 // pred_fallthru
        _
      %p2028 = scmp.le.s32.totalorder 2, %s17
      // Predicated region
      $region49: #{tpu_custom_call.1} parent=5 // pred_check
        %p2029 = pneg %p2028
      $region50: #{tpu_custom_call.1} parent=5 // pred_check_branch
        %2031 = sbr.rel (%p2029) target = $region52
      $region51: #{tpu_custom_call.1} parent=5 // pred_region
        %s2032 = ssub.s32 %s17, 2
        // Predicated region
        $region53: #{tpu_custom_call.1} parent=51 // pred_check
          %p2033 = pneg %p177
        $region54: #{tpu_custom_call.1} parent=51 // pred_check_branch
          %2035 = sbr.rel (%p2033) target = $region56
        $region55: #{tpu_custom_call.1} parent=51 // pred_region
          %s2036 = sand.u32 %s162, 1
          %s2037 = scalar_lea.sflag [#allocation4], %s2036
          %s2038 = sand.u32 %s162, 1
          %s2039 = smul.addr %s2038, 2
          %s2040 = scalar_lea.vmem [#allocation3], %s2039
          %2041 = dma.done %s2037, 32
        $region56: #{tpu_custom_call.1} parent=51 // pred_fallthru
          _
      $region52: #{tpu_custom_call.1} parent=5 // pred_fallthru
        _
    $region6: #{tpu_custom_call.1} parent=1 // loop_footer
      %s21 = sadd.s32 1, %s17
    $region7: #{tpu_custom_call.1} parent=1 // loop_footer_branch
      %16 = sbr.rel target = $region3
    $region8: #{tpu_custom_call.1} parent=1 // loop_exit
      _
    %2042 = vsyncpa [#allocation4], 1
    %s2043 = scalar_lea.sflag [#allocation4], 1
    %2044 = vsyncpa %s2043, 1

</llo_original>
